<compile_context>
chip_gen: v7x
topology: tpu7x:2x2x1
jax: 0.10.0
libtpu: 0.0.40
codegen_flags: <defaults>
</compile_context>

<pallas_src>
import functools
import math

import jax
import jax.numpy as jnp
from jax import lax
from jax.experimental import pallas as pl
from jax.experimental.pallas import tpu as pltpu

_LN_EPS = 1e-5
_MASK_BIAS = -1e30  # finite large-negative (robust vs -inf NaN on fully-masked rows)

# Explicit scoped-VMEM budget: defaults (16/32 MiB) are too small for resident
# weights at realistic model dims; stay under the chip's physical capacity.
try:
    _VMEM_CAP = int(pltpu.get_tpu_info().vmem_capacity_bytes)
except Exception:  # conservative fallback (v7x physical VMEM per core)
    _VMEM_CAP = 64 * 1024 * 1024
_VMEM_LIMIT = int(min(_VMEM_CAP - 8 * 1024 * 1024, 100 * 1024 * 1024))


def _cparams():
    return pltpu.CompilerParams(
        dimension_semantics=("parallel",),
        vmem_limit_bytes=_VMEM_LIMIT,
    )


def _choose_tm(M, target):
    """Row tile: full M if it fits the target; else largest multiple of 8 <=
    target dividing M; else `target` rounded to 8 (wrapper pads M)."""
    if M <= target:
        return M
    t = (target // 8) * 8
    while t >= 8:
        if M % t == 0:
            return t
        t -= 8
    return max(8, (target // 8) * 8)


def _pad_rows(x, mp):
    m = x.shape[0]
    if mp == m:
        return x
    return jnp.pad(x, ((0, mp - m), (0, 0)))


# ----------------------------------------------------------------------------
# Kernel 1: fused QKV projection + multi-head attention (one batch per step)
# ----------------------------------------------------------------------------

def _attn_kernel(x_ref, wqkv_ref, bqkv_ref, bias_ref, o_ref, *, n_head, scale):
    # x: (1, S, D) bf16; wqkv: (D, 3D) bf16; bqkv: (1, 3D) f32; bias: (1, 1, S) f32.
    x = x_ref[0]                                                    # (S, D)
    qkv = jnp.dot(x, wqkv_ref[...], preferred_element_type=jnp.float32)
    qkv = qkv + bqkv_ref[...]                                       # (S, 3D) f32
    bias = bias_ref[0]                                              # (1, S) f32
    d = wqkv_ref.shape[0]
    hd = d // n_head
    ctxs = []
    for h in range(n_head):  # static loop; one head's (S,S) scores live at a time
        q = qkv[:, h * hd:(h + 1) * hd].astype(jnp.bfloat16)
        k = qkv[:, d + h * hd:d + (h + 1) * hd].astype(jnp.bfloat16)
        v = qkv[:, 2 * d + h * hd:2 * d + (h + 1) * hd].astype(jnp.bfloat16)
        s = lax.dot_general(q, k, (((1,), (1,)), ((), ())),
                            preferred_element_type=jnp.float32)     # (S, S)
        s = s * scale + bias                                        # key-mask bias
        m = jnp.max(s, axis=-1, keepdims=True)
        p = jnp.exp(s - m)
        denom = jnp.sum(p, axis=-1, keepdims=True)
        attn = p / denom                                            # exact softmax
        ctxs.append(jnp.dot(attn.astype(jnp.bfloat16), v,
                            preferred_element_type=jnp.float32))    # (S, hd)
    o_ref[0] = jnp.concatenate(ctxs, axis=-1).astype(o_ref.dtype)   # (S, D) bf16


def attention_fused(x, wqkv, bqkv, mask_bias, *, n_head):
    """x: (B, S, D) bf16; wqkv: (D, 3D) bf16; bqkv: (3D,) f32;
    mask_bias: (B, 1, S) f32 additive key-padding bias -> (B, S, D) bf16."""
    B, S, D = x.shape
    hd = D // n_head
    scale = 1.0 / (math.sqrt(hd) + 1e-8)   # matches 1/(sqrt(dk)+1e-8) in the reference
    return pl.pallas_call(
        functools.partial(_attn_kernel, n_head=n_head, scale=scale),
        out_shape=jax.ShapeDtypeStruct((B, S, D), jnp.bfloat16),
        grid=(B,),
        in_specs=[
            pl.BlockSpec((1, S, D), lambda b: (b, 0, 0)),
            pl.BlockSpec((D, 3 * D), lambda b: (0, 0)),
            pl.BlockSpec((1, 3 * D), lambda b: (0, 0)),
            pl.BlockSpec((1, 1, S), lambda b: (b, 0, 0)),
        ],
        out_specs=pl.BlockSpec((1, S, D), lambda b: (b, 0, 0)),
        compiler_params=_cparams(),
    )(x, wqkv, bqkv.reshape(1, 3 * D), mask_bias)


# ----------------------------------------------------------------------------
# Kernel 2: fused output projection + residual add + LayerNorm
# ----------------------------------------------------------------------------

def _proj_add_ln_kernel(ctx_ref, w_ref, b_ref, res_ref, g_ref, bt_ref, o_ref, *, eps):
    o = jnp.dot(ctx_ref[...], w_ref[...], preferred_element_type=jnp.float32)
    o = o + b_ref[...]
    y = res_ref[...].astype(jnp.float32) + o
    mean = jnp.mean(y, axis=-1, keepdims=True)
    var = jnp.mean(jnp.square(y - mean), axis=-1, keepdims=True)
    o_ref[...] = ((y - mean) * lax.rsqrt(var + eps) * g_ref[...]
                  + bt_ref[...]).astype(o_ref.dtype)


def proj_add_layernorm(ctx, w, b, residual, gamma, beta, *, tm_target=512):
    """LayerNorm(residual + ctx @ w + b).  ctx, residual bf16 (M, D) -> bf16 (M, D)."""
    M, D = ctx.shape
    tm = _choose_tm(M, tm_target)
    mp = -(-M // tm) * tm
    ctx_p = _pad_rows(ctx, mp)
    res_p = _pad_rows(residual, mp)
    out = pl.pallas_call(
        functools.partial(_proj_add_ln_kernel, eps=_LN_EPS),
        out_shape=jax.ShapeDtypeStruct((mp, D), jnp.bfloat16),
        grid=(mp // tm,),
        in_specs=[
            pl.BlockSpec((tm, D), lambda i: (i, 0)),
            pl.BlockSpec((D, D), lambda i: (0, 0)),
            pl.BlockSpec((1, D), lambda i: (0, 0)),
            pl.BlockSpec((tm, D), lambda i: (i, 0)),
            pl.BlockSpec((1, D), lambda i: (0, 0)),
            pl.BlockSpec((1, D), lambda i: (0, 0)),
        ],
        out_specs=pl.BlockSpec((tm, D), lambda i: (i, 0)),
        compiler_params=_cparams(),
    )(ctx_p, w, b.reshape(1, D), res_p, gamma.reshape(1, D), beta.reshape(1, D))
    return out if mp == M else out[:M]


# ----------------------------------------------------------------------------
# Kernel 3: fused PositionWiseFFN  (linear+ReLU -> linear -> +residual -> LN)
# ----------------------------------------------------------------------------

def _ffn_kernel(x_ref, w1_ref, b1_ref, w2_ref, b2_ref, g_ref, bt_ref, o_ref, *, eps):
    x = x_ref[...]                                            # (tm, D) bf16 residual
    h = jnp.dot(x, w1_ref[...], preferred_element_type=jnp.float32) + b1_ref[...]
    h = jnp.maximum(h, 0.0)                                   # (tm, 4D) stays on-chip
    o = jnp.dot(h.astype(jnp.bfloat16), w2_ref[...],
                preferred_element_type=jnp.float32) + b2_ref[...]
    y = x.astype(jnp.float32) + o
    mean = jnp.mean(y, axis=-1, keepdims=True)
    var = jnp.mean(jnp.square(y - mean), axis=-1, keepdims=True)
    o_ref[...] = ((y - mean) * lax.rsqrt(var + eps) * g_ref[...]
                  + bt_ref[...]).astype(o_ref.dtype)


def ffn_fused(x, w1, b1, w2, b2, gamma, beta, *, tm_target=256):
    """x: (M, D) bf16 -> (M, D) bf16.  Hidden (tm, 4D) never leaves the chip."""
    M, D = x.shape
    H4 = w1.shape[1]
    tm = _choose_tm(M, tm_target)   # moderate tile: (tm,4D) f32 hidden bounded for v7x
    mp = -(-M // tm) * tm
    x_p = _pad_rows(x, mp)
    out = pl.pallas_call(
        functools.partial(_ffn_kernel, eps=_LN_EPS),
        out_shape=jax.ShapeDtypeStruct((mp, D), jnp.bfloat16),
        grid=(mp // tm,),
        in_specs=[
            pl.BlockSpec((tm, D), lambda i: (i, 0)),
            pl.BlockSpec((D, H4), lambda i: (0, 0)),
            pl.BlockSpec((1, H4), lambda i: (0, 0)),
            pl.BlockSpec((H4, D), lambda i: (0, 0)),
            pl.BlockSpec((1, D), lambda i: (0, 0)),
            pl.BlockSpec((1, D), lambda i: (0, 0)),
            pl.BlockSpec((1, D), lambda i: (0, 0)),
        ],
        out_specs=pl.BlockSpec((tm, D), lambda i: (i, 0)),
        compiler_params=_cparams(),
    )(x_p, w1, b1.reshape(1, H4), w2, b2.reshape(1, D),
      gamma.reshape(1, D), beta.reshape(1, D))
    return out if mp == M else out[:M]


# ----------------------------------------------------------------------------
# Module-level forward (glue around the kernels)
# ----------------------------------------------------------------------------

def encoder_layer(p, x, mask_bias, n_head):
    """EncoderLayer_revise.forward: MultiHead self-attention + FFN.  x bf16 (B,S,D)."""
    B, S, D = x.shape
    M = B * S

    ctx = attention_fused(x, p["wqkv"], p["bqkv"], mask_bias, n_head=n_head)  # (B,S,D) bf16
    ctx = ctx.reshape(M, D)          # contiguous reshape — no data movement
    xf = x.reshape(M, D)             # residual (bf16)

    attn_out = proj_add_layernorm(ctx, p["wo"], p["bo"], xf,
                                  p["ln1_g"], p["ln1_b"])        # (M, D) bf16

    out = ffn_fused(attn_out, p["w1"], p["b1"], p["w2"], p["b2"],
                    p["ln2_g"], p["ln2_b"])                      # (M, D) bf16
    return out.reshape(B, S, D)


def encoder_forward(params, xz, key_pad_mask, *, n_head):
    """Encoder_revise.forward (eval mode).

    xz: (B, S, D) f32; key_pad_mask: (B, S) bool, True = masked (padding) key.
    Padding masks are query-independent, so the additive bias is only (B, 1, S)
    (S x less mask traffic than a full (B, S, S) mask).
    TODO(synk): arbitrary per-query (B, Sq, Sk) masks would need a (B,S,S) bias path.
    """
    B, S, _ = xz.shape
    mask_bias = jnp.where(key_pad_mask, _MASK_BIAS, 0.0).astype(jnp.float32)
    mask_bias = mask_bias.reshape(B, 1, S)
    x = xz.astype(jnp.bfloat16)      # residual stream kept bf16 between kernels
    for layer_p in params["layers"]:
        x = encoder_layer(layer_p, x, mask_bias, n_head)
    return x.astype(jnp.float32)


# ----------------------------------------------------------------------------
# Deterministic parameter init (matches nn.Linear / nn.LayerNorm defaults)
# ----------------------------------------------------------------------------

def _init_linear(key, din, dout):
    kw, kb = jax.random.split(key)
    bound = 1.0 / math.sqrt(din)
    w = jax.random.uniform(kw, (din, dout), jnp.float32, -bound, bound)
    b = jax.random.uniform(kb, (dout,), jnp.float32, -bound, bound)
    return w, b


def init_encoder_params(key, emb_dim, n_head, n_layer):
    assert emb_dim % n_head == 0
    layers = []
    for lk in jax.random.split(key, n_layer):
        ks = jax.random.split(lk, 6)
        wq, bq = _init_linear(ks[0], emb_dim, emb_dim)
        wk, bk = _init_linear(ks[1], emb_dim, emb_dim)
        wv, bv = _init_linear(ks[2], emb_dim, emb_dim)
        wqkv = jnp.concatenate([wq, wk, wv], axis=1)     # scale applied in-kernel
        bqkv = jnp.concatenate([bq, bk, bv], axis=0)
        wo, bo = _init_linear(ks[3], emb_dim, emb_dim)
        w1, b1 = _init_linear(ks[4], emb_dim, 4 * emb_dim)
        w2, b2 = _init_linear(ks[5], 4 * emb_dim, emb_dim)
        layers.append({
            "wqkv": wqkv.astype(jnp.bfloat16), "bqkv": bqkv,
            "wo": wo.astype(jnp.bfloat16), "bo": bo,
            "ln1_g": jnp.ones((emb_dim,), jnp.float32),
            "ln1_b": jnp.zeros((emb_dim,), jnp.float32),
            "w1": w1.astype(jnp.bfloat16), "b1": b1,
            "w2": w2.astype(jnp.bfloat16), "b2": b2,
            "ln2_g": jnp.ones((emb_dim,), jnp.float32),
            "ln2_b": jnp.zeros((emb_dim,), jnp.float32),
        })
    return {"layers": layers}


# ----------------------------------------------------------------------------
# Main
# ----------------------------------------------------------------------------

if __name__ == "__main__":
    B, S, D, N_HEAD, N_LAYER = 2, 8, 32, 4, 2

    key = jax.random.PRNGKey(0)
    kp, kx = jax.random.split(key)

    params = init_encoder_params(kp, D, N_HEAD, N_LAYER)
    xz = jax.random.normal(kx, (B, S, D), jnp.float32)

    # Key-padding mask: sequence lengths [8, 6]; True = masked (key is padding).
    lengths = jnp.array([S, S - 2], jnp.int32)
    key_pad_mask = jnp.arange(S)[None, :] >= lengths[:, None]   # (B, S) bool

    fwd = jax.jit(functools.partial(encoder_forward, n_head=N_HEAD))
    out = fwd(params, xz, key_pad_mask)
    jax.block_until_ready(out)

    assert out.shape == (B, S, D), out.shape
    assert bool(jnp.all(jnp.isfinite(out)))
    print("KERNEL_OK")
</pallas_src>

<mosaic_0001>
module attributes {stable_mosaic.version = 11 : i64} {
  func.func @_attn_kernel(%arg0: i32, %arg1: memref<1x8x32xbf16, #tpu.memory_space<vmem>>, %arg2: memref<32x96xbf16, #tpu.memory_space<vmem>>, %arg3: memref<1x96xf32, #tpu.memory_space<vmem>>, %arg4: memref<1x1x8xf32, #tpu.memory_space<vmem>>, %arg5: memref<1x8x32xbf16, #tpu.memory_space<vmem>>) attributes {dimension_semantics = [#tpu.dimension_semantics<parallel>], iteration_bounds = array<i64: 2>, scalar_prefetch = 0 : i64, scratch_operands = 0 : i64, tpu.core_type = #tpu.core_type<tc>, window_params = [{transform_indices = @transform_0, window_bounds = array<i64: 1, 8, 32>}, {pipeline_mode = #tpu.pipeline_mode<synchronous>, transform_indices = @transform_1, window_bounds = array<i64: 32, 96>}, {pipeline_mode = #tpu.pipeline_mode<synchronous>, transform_indices = @transform_2, window_bounds = array<i64: 1, 96>}, {transform_indices = @transform_3, window_bounds = array<i64: 1, 1, 8>}, {transform_indices = @transform_4, window_bounds = array<i64: 1, 8, 32>}]} {
    %c0 = arith.constant 0 : index
    %c0_0 = arith.constant 0 : index
    %c0_1 = arith.constant 0 : index
    %0 = vector.load %arg1[%c0, %c0_0, %c0_1] : memref<1x8x32xbf16, #tpu.memory_space<vmem>>, vector<1x8x32xbf16>
    %1 = vector.shape_cast %0 : vector<1x8x32xbf16> to vector<8x32xbf16>
    %c0_2 = arith.constant 0 : index
    %c0_3 = arith.constant 0 : index
    %2 = vector.load %arg2[%c0_2, %c0_3] : memref<32x96xbf16, #tpu.memory_space<vmem>>, vector<32x96xbf16>
    %cst = arith.constant dense<0.000000e+00> : vector<8x96xf32>
    %3 = tpu.matmul %1, %2, %cst {dimension_numbers = #tpu.dot_dimension_numbers<[1], [0], [0], [1], [0, 0, 1, 1], [], []>} : vector<8x32xbf16>, vector<32x96xbf16>, vector<8x96xf32> -> vector<8x96xf32>
    %c0_4 = arith.constant 0 : index
    %c0_5 = arith.constant 0 : index
    %4 = vector.load %arg3[%c0_4, %c0_5] : memref<1x96xf32, #tpu.memory_space<vmem>>, vector<1x96xf32>
    %5 = vector.broadcast %4 : vector<1x96xf32> to vector<8x96xf32>
    %6 = arith.addf %3, %5 : vector<8x96xf32>
    %c0_6 = arith.constant 0 : index
    %c0_7 = arith.constant 0 : index
    %c0_8 = arith.constant 0 : index
    %7 = vector.load %arg4[%c0_6, %c0_7, %c0_8] : memref<1x1x8xf32, #tpu.memory_space<vmem>>, vector<1x1x8xf32>
    %8 = vector.shape_cast %7 : vector<1x1x8xf32> to vector<1x8xf32>
    %9 = vector.extract_strided_slice %6 {offsets = [0, 0], sizes = [8, 8], strides = [1, 1]} : vector<8x96xf32> to vector<8x8xf32>
    %10 = arith.truncf %9 : vector<8x8xf32> to vector<8x8xbf16>
    %11 = vector.extract_strided_slice %6 {offsets = [0, 32], sizes = [8, 8], strides = [1, 1]} : vector<8x96xf32> to vector<8x8xf32>
    %12 = arith.truncf %11 : vector<8x8xf32> to vector<8x8xbf16>
    %13 = vector.extract_strided_slice %6 {offsets = [0, 64], sizes = [8, 8], strides = [1, 1]} : vector<8x96xf32> to vector<8x8xf32>
    %14 = arith.truncf %13 : vector<8x8xf32> to vector<8x8xbf16>
    %cst_9 = arith.constant dense<0.000000e+00> : vector<8x8xf32>
    %15 = tpu.matmul %10, %12, %cst_9 {dimension_numbers = #tpu.dot_dimension_numbers<[1], [1], [0], [0], [0, 0, 1, 0], [], []>} : vector<8x8xbf16>, vector<8x8xbf16>, vector<8x8xf32> -> vector<8x8xf32>
    %cst_10 = arith.constant 0.353553385 : f32
    %16 = vector.broadcast %cst_10 : f32 to vector<8x8xf32>
    %17 = arith.mulf %15, %16 : vector<8x8xf32>
    %18 = vector.broadcast %8 : vector<1x8xf32> to vector<8x8xf32>
    %19 = arith.addf %17, %18 : vector<8x8xf32>
    %cst_11 = arith.constant dense<0xFF800000> : vector<8xf32>
    %20 = vector.multi_reduction <maximumf>, %19, %cst_11 [1] : vector<8x8xf32> to vector<8xf32>
    %21 = vector.shape_cast %20 : vector<8xf32> to vector<8x1xf32>
    %22 = vector.broadcast %21 : vector<8x1xf32> to vector<8x8xf32>
    %23 = arith.subf %19, %22 : vector<8x8xf32>
    %24 = math.exp %23 : vector<8x8xf32>
    %cst_12 = arith.constant dense<0.000000e+00> : vector<8xf32>
    %25 = vector.multi_reduction <add>, %24, %cst_12 [1] : vector<8x8xf32> to vector<8xf32>
    %26 = vector.shape_cast %25 : vector<8xf32> to vector<8x1xf32>
    %27 = vector.broadcast %26 : vector<8x1xf32> to vector<8x8xf32>
    %28 = arith.divf %24, %27 : vector<8x8xf32>
    %29 = arith.truncf %28 : vector<8x8xf32> to vector<8x8xbf16>
    %cst_13 = arith.constant dense<0.000000e+00> : vector<8x8xf32>
    %30 = tpu.matmul %29, %14, %cst_13 {dimension_numbers = #tpu.dot_dimension_numbers<[1], [0], [0], [1], [0, 0, 1, 1], [], []>} : vector<8x8xbf16>, vector<8x8xbf16>, vector<8x8xf32> -> vector<8x8xf32>
    %31 = vector.extract_strided_slice %6 {offsets = [0, 8], sizes = [8, 8], strides = [1, 1]} : vector<8x96xf32> to vector<8x8xf32>
    %32 = arith.truncf %31 : vector<8x8xf32> to vector<8x8xbf16>
    %33 = vector.extract_strided_slice %6 {offsets = [0, 40], sizes = [8, 8], strides = [1, 1]} : vector<8x96xf32> to vector<8x8xf32>
    %34 = arith.truncf %33 : vector<8x8xf32> to vector<8x8xbf16>
    %35 = vector.extract_strided_slice %6 {offsets = [0, 72], sizes = [8, 8], strides = [1, 1]} : vector<8x96xf32> to vector<8x8xf32>
    %36 = arith.truncf %35 : vector<8x8xf32> to vector<8x8xbf16>
    %cst_14 = arith.constant dense<0.000000e+00> : vector<8x8xf32>
    %37 = tpu.matmul %32, %34, %cst_14 {dimension_numbers = #tpu.dot_dimension_numbers<[1], [1], [0], [0], [0, 0, 1, 0], [], []>} : vector<8x8xbf16>, vector<8x8xbf16>, vector<8x8xf32> -> vector<8x8xf32>
    %cst_15 = arith.constant 0.353553385 : f32
    %38 = vector.broadcast %cst_15 : f32 to vector<8x8xf32>
    %39 = arith.mulf %37, %38 : vector<8x8xf32>
    %40 = vector.broadcast %8 : vector<1x8xf32> to vector<8x8xf32>
    %41 = arith.addf %39, %40 : vector<8x8xf32>
    %cst_16 = arith.constant dense<0xFF800000> : vector<8xf32>
    %42 = vector.multi_reduction <maximumf>, %41, %cst_16 [1] : vector<8x8xf32> to vector<8xf32>
    %43 = vector.shape_cast %42 : vector<8xf32> to vector<8x1xf32>
    %44 = vector.broadcast %43 : vector<8x1xf32> to vector<8x8xf32>
    %45 = arith.subf %41, %44 : vector<8x8xf32>
    %46 = math.exp %45 : vector<8x8xf32>
    %cst_17 = arith.constant dense<0.000000e+00> : vector<8xf32>
    %47 = vector.multi_reduction <add>, %46, %cst_17 [1] : vector<8x8xf32> to vector<8xf32>
    %48 = vector.shape_cast %47 : vector<8xf32> to vector<8x1xf32>
    %49 = vector.broadcast %48 : vector<8x1xf32> to vector<8x8xf32>
    %50 = arith.divf %46, %49 : vector<8x8xf32>
    %51 = arith.truncf %50 : vector<8x8xf32> to vector<8x8xbf16>
    %cst_18 = arith.constant dense<0.000000e+00> : vector<8x8xf32>
    %52 = tpu.matmul %51, %36, %cst_18 {dimension_numbers = #tpu.dot_dimension_numbers<[1], [0], [0], [1], [0, 0, 1, 1], [], []>} : vector<8x8xbf16>, vector<8x8xbf16>, vector<8x8xf32> -> vector<8x8xf32>
    %53 = vector.extract_strided_slice %6 {offsets = [0, 16], sizes = [8, 8], strides = [1, 1]} : vector<8x96xf32> to vector<8x8xf32>
    %54 = arith.truncf %53 : vector<8x8xf32> to vector<8x8xbf16>
    %55 = vector.extract_strided_slice %6 {offsets = [0, 48], sizes = [8, 8], strides = [1, 1]} : vector<8x96xf32> to vector<8x8xf32>
    %56 = arith.truncf %55 : vector<8x8xf32> to vector<8x8xbf16>
    %57 = vector.extract_strided_slice %6 {offsets = [0, 80], sizes = [8, 8], strides = [1, 1]} : vector<8x96xf32> to vector<8x8xf32>
    %58 = arith.truncf %57 : vector<8x8xf32> to vector<8x8xbf16>
    %cst_19 = arith.constant dense<0.000000e+00> : vector<8x8xf32>
    %59 = tpu.matmul %54, %56, %cst_19 {dimension_numbers = #tpu.dot_dimension_numbers<[1], [1], [0], [0], [0, 0, 1, 0], [], []>} : vector<8x8xbf16>, vector<8x8xbf16>, vector<8x8xf32> -> vector<8x8xf32>
    %cst_20 = arith.constant 0.353553385 : f32
    %60 = vector.broadcast %cst_20 : f32 to vector<8x8xf32>
    %61 = arith.mulf %59, %60 : vector<8x8xf32>
    %62 = vector.broadcast %8 : vector<1x8xf32> to vector<8x8xf32>
    %63 = arith.addf %61, %62 : vector<8x8xf32>
    %cst_21 = arith.constant dense<0xFF800000> : vector<8xf32>
    %64 = vector.multi_reduction <maximumf>, %63, %cst_21 [1] : vector<8x8xf32> to vector<8xf32>
    %65 = vector.shape_cast %64 : vector<8xf32> to vector<8x1xf32>
    %66 = vector.broadcast %65 : vector<8x1xf32> to vector<8x8xf32>
    %67 = arith.subf %63, %66 : vector<8x8xf32>
    %68 = math.exp %67 : vector<8x8xf32>
    %cst_22 = arith.constant dense<0.000000e+00> : vector<8xf32>
    %69 = vector.multi_reduction <add>, %68, %cst_22 [1] : vector<8x8xf32> to vector<8xf32>
    %70 = vector.shape_cast %69 : vector<8xf32> to vector<8x1xf32>
    %71 = vector.broadcast %70 : vector<8x1xf32> to vector<8x8xf32>
    %72 = arith.divf %68, %71 : vector<8x8xf32>
    %73 = arith.truncf %72 : vector<8x8xf32> to vector<8x8xbf16>
    %cst_23 = arith.constant dense<0.000000e+00> : vector<8x8xf32>
    %74 = tpu.matmul %73, %58, %cst_23 {dimension_numbers = #tpu.dot_dimension_numbers<[1], [0], [0], [1], [0, 0, 1, 1], [], []>} : vector<8x8xbf16>, vector<8x8xbf16>, vector<8x8xf32> -> vector<8x8xf32>
    %75 = vector.extract_strided_slice %6 {offsets = [0, 24], sizes = [8, 8], strides = [1, 1]} : vector<8x96xf32> to vector<8x8xf32>
    %76 = arith.truncf %75 : vector<8x8xf32> to vector<8x8xbf16>
    %77 = vector.extract_strided_slice %6 {offsets = [0, 56], sizes = [8, 8], strides = [1, 1]} : vector<8x96xf32> to vector<8x8xf32>
    %78 = arith.truncf %77 : vector<8x8xf32> to vector<8x8xbf16>
    %79 = vector.extract_strided_slice %6 {offsets = [0, 88], sizes = [8, 8], strides = [1, 1]} : vector<8x96xf32> to vector<8x8xf32>
    %80 = arith.truncf %79 : vector<8x8xf32> to vector<8x8xbf16>
    %cst_24 = arith.constant dense<0.000000e+00> : vector<8x8xf32>
    %81 = tpu.matmul %76, %78, %cst_24 {dimension_numbers = #tpu.dot_dimension_numbers<[1], [1], [0], [0], [0, 0, 1, 0], [], []>} : vector<8x8xbf16>, vector<8x8xbf16>, vector<8x8xf32> -> vector<8x8xf32>
    %cst_25 = arith.constant 0.353553385 : f32
    %82 = vector.broadcast %cst_25 : f32 to vector<8x8xf32>
    %83 = arith.mulf %81, %82 : vector<8x8xf32>
    %84 = vector.broadcast %8 : vector<1x8xf32> to vector<8x8xf32>
    %85 = arith.addf %83, %84 : vector<8x8xf32>
    %cst_26 = arith.constant dense<0xFF800000> : vector<8xf32>
    %86 = vector.multi_reduction <maximumf>, %85, %cst_26 [1] : vector<8x8xf32> to vector<8xf32>
    %87 = vector.shape_cast %86 : vector<8xf32> to vector<8x1xf32>
    %88 = vector.broadcast %87 : vector<8x1xf32> to vector<8x8xf32>
    %89 = arith.subf %85, %88 : vector<8x8xf32>
    %90 = math.exp %89 : vector<8x8xf32>
    %cst_27 = arith.constant dense<0.000000e+00> : vector<8xf32>
    %91 = vector.multi_reduction <add>, %90, %cst_27 [1] : vector<8x8xf32> to vector<8xf32>
    %92 = vector.shape_cast %91 : vector<8xf32> to vector<8x1xf32>
    %93 = vector.broadcast %92 : vector<8x1xf32> to vector<8x8xf32>
    %94 = arith.divf %90, %93 : vector<8x8xf32>
    %95 = arith.truncf %94 : vector<8x8xf32> to vector<8x8xbf16>
    %cst_28 = arith.constant dense<0.000000e+00> : vector<8x8xf32>
    %96 = tpu.matmul %95, %80, %cst_28 {dimension_numbers = #tpu.dot_dimension_numbers<[1], [0], [0], [1], [0, 0, 1, 1], [], []>} : vector<8x8xbf16>, vector<8x8xbf16>, vector<8x8xf32> -> vector<8x8xf32>
    %97 = tpu.concatenate %30, %52, %74, %96 in 1 : vector<8x8xf32>, vector<8x8xf32>, vector<8x8xf32>, vector<8x8xf32> -> vector<8x32xf32>
    %98 = arith.truncf %97 : vector<8x32xf32> to vector<8x32xbf16>
    %c0_29 = arith.constant 0 : index
    %c0_30 = arith.constant 0 : index
    %c0_31 = arith.constant 0 : index
    %99 = vector.load %arg5[%c0_29, %c0_30, %c0_31] : memref<1x8x32xbf16, #tpu.memory_space<vmem>>, vector<1x8x32xbf16>
    %100 = vector.shape_cast %99 : vector<1x8x32xbf16> to vector<8x32xbf16>
    %101 = vector.shape_cast %98 : vector<8x32xbf16> to vector<1x8x32xbf16>
    tpu.vector_store %arg5[%c0_29, %c0_30, %c0_31], %101 {strides = array<i32>} : memref<1x8x32xbf16, #tpu.memory_space<vmem>>, vector<1x8x32xbf16>,
    return
  }
  func.func @transform_0(%arg0: i32) -> (i32, i32, i32) {
    %c0_i32 = arith.constant 0 : i32
    %c0_i32_0 = arith.constant 0 : i32
    %c0_i32_1 = arith.constant 0 : i32
    return %arg0, %c0_i32, %c0_i32_0 : i32, i32, i32
  }
  func.func @transform_1(%arg0: i32) -> (i32, i32) {
    %c0_i32 = arith.constant 0 : i32
    %c0_i32_0 = arith.constant 0 : i32
    %c0_i32_1 = arith.constant 0 : i32
    return %c0_i32, %c0_i32_0 : i32, i32
  }
  func.func @transform_2(%arg0: i32) -> (i32, i32) {
    %c0_i32 = arith.constant 0 : i32
    %c0_i32_0 = arith.constant 0 : i32
    %c0_i32_1 = arith.constant 0 : i32
    return %c0_i32, %c0_i32_0 : i32, i32
  }
  func.func @transform_3(%arg0: i32) -> (i32, i32, i32) {
    %c0_i32 = arith.constant 0 : i32
    %c0_i32_0 = arith.constant 0 : i32
    %c0_i32_1 = arith.constant 0 : i32
    return %arg0, %c0_i32, %c0_i32_0 : i32, i32, i32
  }
  func.func @transform_4(%arg0: i32) -> (i32, i32, i32) {
    %c0_i32 = arith.constant 0 : i32
    %c0_i32_0 = arith.constant 0 : i32
    %c0_i32_1 = arith.constant 0 : i32
    return %arg0, %c0_i32, %c0_i32_0 : i32, i32, i32
  }
}

module attributes {stable_mosaic.version = 11 : i64} {
  func.func @_proj_add_ln_kernel(%arg0: i32, %arg1: memref<16x32xbf16, #tpu.memory_space<vmem>>, %arg2: memref<32x32xbf16, #tpu.memory_space<vmem>>, %arg3: memref<1x32xf32, #tpu.memory_space<vmem>>, %arg4: memref<16x32xbf16, #tpu.memory_space<vmem>>, %arg5: memref<1x32xf32, #tpu.memory_space<vmem>>, %arg6: memref<1x32xf32, #tpu.memory_space<vmem>>, %arg7: memref<16x32xbf16, #tpu.memory_space<vmem>>) attributes {dimension_semantics = [#tpu.dimension_semantics<parallel>], iteration_bounds = array<i64: 1>, scalar_prefetch = 0 : i64, scratch_operands = 0 : i64, tpu.core_type = #tpu.core_type<tc>, window_params = [{transform_indices = @transform_0, window_bounds = array<i64: 16, 32>}, {pipeline_mode = #tpu.pipeline_mode<synchronous>, transform_indices = @transform_1, window_bounds = array<i64: 32, 32>}, {pipeline_mode = #tpu.pipeline_mode<synchronous>, transform_indices = @transform_2, window_bounds = array<i64: 1, 32>}, {transform_indices = @transform_3, window_bounds = array<i64: 16, 32>}, {pipeline_mode = #tpu.pipeline_mode<synchronous>, transform_indices = @transform_4, window_bounds = array<i64: 1, 32>}, {pipeline_mode = #tpu.pipeline_mode<synchronous>, transform_indices = @transform_5, window_bounds = array<i64: 1, 32>}, {transform_indices = @transform_6, window_bounds = array<i64: 16, 32>}]} {
    %c0 = arith.constant 0 : index
    %c0_0 = arith.constant 0 : index
    %0 = vector.load %arg1[%c0, %c0_0] : memref<16x32xbf16, #tpu.memory_space<vmem>>, vector<16x32xbf16>
    %c0_1 = arith.constant 0 : index
    %c0_2 = arith.constant 0 : index
    %1 = vector.load %arg2[%c0_1, %c0_2] : memref<32x32xbf16, #tpu.memory_space<vmem>>, vector<32x32xbf16>
    %cst = arith.constant dense<0.000000e+00> : vector<16x32xf32>
    %2 = tpu.matmul %0, %1, %cst {dimension_numbers = #tpu.dot_dimension_numbers<[1], [0], [0], [1], [0, 0, 1, 1], [], []>} : vector<16x32xbf16>, vector<32x32xbf16>, vector<16x32xf32> -> vector<16x32xf32>
    %c0_3 = arith.constant 0 : index
    %c0_4 = arith.constant 0 : index
    %3 = vector.load %arg3[%c0_3, %c0_4] : memref<1x32xf32, #tpu.memory_space<vmem>>, vector<1x32xf32>
    %4 = vector.broadcast %3 : vector<1x32xf32> to vector<16x32xf32>
    %5 = arith.addf %2, %4 : vector<16x32xf32>
    %c0_5 = arith.constant 0 : index
    %c0_6 = arith.constant 0 : index
    %6 = vector.load %arg4[%c0_5, %c0_6] : memref<16x32xbf16, #tpu.memory_space<vmem>>, vector<16x32xbf16>
    %7 = arith.extf %6 : vector<16x32xbf16> to vector<16x32xf32>
    %8 = arith.addf %7, %5 : vector<16x32xf32>
    %cst_7 = arith.constant dense<0.000000e+00> : vector<16xf32>
    %9 = vector.multi_reduction <add>, %8, %cst_7 [1] : vector<16x32xf32> to vector<16xf32>
    %10 = vector.shape_cast %9 : vector<16xf32> to vector<16x1xf32>
    %cst_8 = arith.constant 3.200000e+01 : f32
    %11 = vector.broadcast %cst_8 : f32 to vector<16x1xf32>
    %12 = arith.divf %10, %11 : vector<16x1xf32>
    %13 = vector.broadcast %12 : vector<16x1xf32> to vector<16x32xf32>
    %14 = arith.subf %8, %13 : vector<16x32xf32>
    %15 = arith.mulf %14, %14 : vector<16x32xf32>
    %cst_9 = arith.constant dense<0.000000e+00> : vector<16xf32>
    %16 = vector.multi_reduction <add>, %15, %cst_9 [1] : vector<16x32xf32> to vector<16xf32>
    %17 = vector.shape_cast %16 : vector<16xf32> to vector<16x1xf32>
    %cst_10 = arith.constant 3.200000e+01 : f32
    %18 = vector.broadcast %cst_10 : f32 to vector<16x1xf32>
    %19 = arith.divf %17, %18 : vector<16x1xf32>
    %20 = vector.broadcast %12 : vector<16x1xf32> to vector<16x32xf32>
    %21 = arith.subf %8, %20 : vector<16x32xf32>
    %cst_11 = arith.constant 9.99999974E-6 : f32
    %22 = vector.broadcast %cst_11 : f32 to vector<16x1xf32>
    %23 = arith.addf %19, %22 : vector<16x1xf32>
    %24 = math.rsqrt %23 : vector<16x1xf32>
    %25 = vector.broadcast %24 : vector<16x1xf32> to vector<16x32xf32>
    %26 = arith.mulf %21, %25 : vector<16x32xf32>
    %c0_12 = arith.constant 0 : index
    %c0_13 = arith.constant 0 : index
    %27 = vector.load %arg5[%c0_12, %c0_13] : memref<1x32xf32, #tpu.memory_space<vmem>>, vector<1x32xf32>
    %28 = vector.broadcast %27 : vector<1x32xf32> to vector<16x32xf32>
    %29 = arith.mulf %26, %28 : vector<16x32xf32>
    %c0_14 = arith.constant 0 : index
    %c0_15 = arith.constant 0 : index
    %30 = vector.load %arg6[%c0_14, %c0_15] : memref<1x32xf32, #tpu.memory_space<vmem>>, vector<1x32xf32>
    %31 = vector.broadcast %30 : vector<1x32xf32> to vector<16x32xf32>
    %32 = arith.addf %29, %31 : vector<16x32xf32>
    %33 = arith.truncf %32 : vector<16x32xf32> to vector<16x32xbf16>
    %c0_16 = arith.constant 0 : index
    %c0_17 = arith.constant 0 : index
    %34 = vector.load %arg7[%c0_16, %c0_17] : memref<16x32xbf16, #tpu.memory_space<vmem>>, vector<16x32xbf16>
    tpu.vector_store %arg7[%c0_16, %c0_17], %33 {strides = array<i32>} : memref<16x32xbf16, #tpu.memory_space<vmem>>, vector<16x32xbf16>,
    return
  }
  func.func @transform_0(%arg0: i32) -> (i32, i32) {
    %c0_i32 = arith.constant 0 : i32
    %c0_i32_0 = arith.constant 0 : i32
    return %arg0, %c0_i32 : i32, i32
  }
  func.func @transform_1(%arg0: i32) -> (i32, i32) {
    %c0_i32 = arith.constant 0 : i32
    %c0_i32_0 = arith.constant 0 : i32
    %c0_i32_1 = arith.constant 0 : i32
    return %c0_i32, %c0_i32_0 : i32, i32
  }
  func.func @transform_2(%arg0: i32) -> (i32, i32) {
    %c0_i32 = arith.constant 0 : i32
    %c0_i32_0 = arith.constant 0 : i32
    %c0_i32_1 = arith.constant 0 : i32
    return %c0_i32, %c0_i32_0 : i32, i32
  }
  func.func @transform_3(%arg0: i32) -> (i32, i32) {
    %c0_i32 = arith.constant 0 : i32
    %c0_i32_0 = arith.constant 0 : i32
    return %arg0, %c0_i32 : i32, i32
  }
  func.func @transform_4(%arg0: i32) -> (i32, i32) {
    %c0_i32 = arith.constant 0 : i32
    %c0_i32_0 = arith.constant 0 : i32
    %c0_i32_1 = arith.constant 0 : i32
    return %c0_i32, %c0_i32_0 : i32, i32
  }
  func.func @transform_5(%arg0: i32) -> (i32, i32) {
    %c0_i32 = arith.constant 0 : i32
    %c0_i32_0 = arith.constant 0 : i32
    %c0_i32_1 = arith.constant 0 : i32
    return %c0_i32, %c0_i32_0 : i32, i32
  }
  func.func @transform_6(%arg0: i32) -> (i32, i32) {
    %c0_i32 = arith.constant 0 : i32
    %c0_i32_0 = arith.constant 0 : i32
    return %arg0, %c0_i32 : i32, i32
  }
}

module attributes {stable_mosaic.version = 11 : i64} {
  func.func @_ffn_kernel(%arg0: i32, %arg1: memref<16x32xbf16, #tpu.memory_space<vmem>>, %arg2: memref<32x128xbf16, #tpu.memory_space<vmem>>, %arg3: memref<1x128xf32, #tpu.memory_space<vmem>>, %arg4: memref<128x32xbf16, #tpu.memory_space<vmem>>, %arg5: memref<1x32xf32, #tpu.memory_space<vmem>>, %arg6: memref<1x32xf32, #tpu.memory_space<vmem>>, %arg7: memref<1x32xf32, #tpu.memory_space<vmem>>, %arg8: memref<16x32xbf16, #tpu.memory_space<vmem>>) attributes {dimension_semantics = [#tpu.dimension_semantics<parallel>], iteration_bounds = array<i64: 1>, scalar_prefetch = 0 : i64, scratch_operands = 0 : i64, tpu.core_type = #tpu.core_type<tc>, window_params = [{transform_indices = @transform_0, window_bounds = array<i64: 16, 32>}, {pipeline_mode = #tpu.pipeline_mode<synchronous>, transform_indices = @transform_1, window_bounds = array<i64: 32, 128>}, {pipeline_mode = #tpu.pipeline_mode<synchronous>, transform_indices = @transform_2, window_bounds = array<i64: 1, 128>}, {pipeline_mode = #tpu.pipeline_mode<synchronous>, transform_indices = @transform_3, window_bounds = array<i64: 128, 32>}, {pipeline_mode = #tpu.pipeline_mode<synchronous>, transform_indices = @transform_4, window_bounds = array<i64: 1, 32>}, {pipeline_mode = #tpu.pipeline_mode<synchronous>, transform_indices = @transform_5, window_bounds = array<i64: 1, 32>}, {pipeline_mode = #tpu.pipeline_mode<synchronous>, transform_indices = @transform_6, window_bounds = array<i64: 1, 32>}, {transform_indices = @transform_7, window_bounds = array<i64: 16, 32>}]} {
    %c0 = arith.constant 0 : index
    %c0_0 = arith.constant 0 : index
    %0 = vector.load %arg1[%c0, %c0_0] : memref<16x32xbf16, #tpu.memory_space<vmem>>, vector<16x32xbf16>
    %c0_1 = arith.constant 0 : index
    %c0_2 = arith.constant 0 : index
    %1 = vector.load %arg2[%c0_1, %c0_2] : memref<32x128xbf16, #tpu.memory_space<vmem>>, vector<32x128xbf16>
    %cst = arith.constant dense<0.000000e+00> : vector<16x128xf32>
    %2 = tpu.matmul %0, %1, %cst {dimension_numbers = #tpu.dot_dimension_numbers<[1], [0], [0], [1], [0, 0, 1, 1], [], []>} : vector<16x32xbf16>, vector<32x128xbf16>, vector<16x128xf32> -> vector<16x128xf32>
    %c0_3 = arith.constant 0 : index
    %c0_4 = arith.constant 0 : index
    %3 = vector.load %arg3[%c0_3, %c0_4] : memref<1x128xf32, #tpu.memory_space<vmem>>, vector<1x128xf32>
    %4 = vector.broadcast %3 : vector<1x128xf32> to vector<16x128xf32>
    %5 = arith.addf %2, %4 : vector<16x128xf32>
    %cst_5 = arith.constant 0.000000e+00 : f32
    %6 = vector.broadcast %cst_5 : f32 to vector<16x128xf32>
    %7 = arith.maximumf %5, %6 : vector<16x128xf32>
    %8 = arith.truncf %7 : vector<16x128xf32> to vector<16x128xbf16>
    %c0_6 = arith.constant 0 : index
    %c0_7 = arith.constant 0 : index
    %9 = vector.load %arg4[%c0_6, %c0_7] : memref<128x32xbf16, #tpu.memory_space<vmem>>, vector<128x32xbf16>
    %cst_8 = arith.constant dense<0.000000e+00> : vector<16x32xf32>
    %10 = tpu.matmul %8, %9, %cst_8 {dimension_numbers = #tpu.dot_dimension_numbers<[1], [0], [0], [1], [0, 0, 1, 1], [], []>} : vector<16x128xbf16>, vector<128x32xbf16>, vector<16x32xf32> -> vector<16x32xf32>
    %c0_9 = arith.constant 0 : index
    %c0_10 = arith.constant 0 : index
    %11 = vector.load %arg5[%c0_9, %c0_10] : memref<1x32xf32, #tpu.memory_space<vmem>>, vector<1x32xf32>
    %12 = vector.broadcast %11 : vector<1x32xf32> to vector<16x32xf32>
    %13 = arith.addf %10, %12 : vector<16x32xf32>
    %14 = arith.extf %0 : vector<16x32xbf16> to vector<16x32xf32>
    %15 = arith.addf %14, %13 : vector<16x32xf32>
    %cst_11 = arith.constant dense<0.000000e+00> : vector<16xf32>
    %16 = vector.multi_reduction <add>, %15, %cst_11 [1] : vector<16x32xf32> to vector<16xf32>
    %17 = vector.shape_cast %16 : vector<16xf32> to vector<16x1xf32>
    %cst_12 = arith.constant 3.200000e+01 : f32
    %18 = vector.broadcast %cst_12 : f32 to vector<16x1xf32>
    %19 = arith.divf %17, %18 : vector<16x1xf32>
    %20 = vector.broadcast %19 : vector<16x1xf32> to vector<16x32xf32>
    %21 = arith.subf %15, %20 : vector<16x32xf32>
    %22 = arith.mulf %21, %21 : vector<16x32xf32>
    %cst_13 = arith.constant dense<0.000000e+00> : vector<16xf32>
    %23 = vector.multi_reduction <add>, %22, %cst_13 [1] : vector<16x32xf32> to vector<16xf32>
    %24 = vector.shape_cast %23 : vector<16xf32> to vector<16x1xf32>
    %cst_14 = arith.constant 3.200000e+01 : f32
    %25 = vector.broadcast %cst_14 : f32 to vector<16x1xf32>
    %26 = arith.divf %24, %25 : vector<16x1xf32>
    %27 = vector.broadcast %19 : vector<16x1xf32> to vector<16x32xf32>
    %28 = arith.subf %15, %27 : vector<16x32xf32>
    %cst_15 = arith.constant 9.99999974E-6 : f32
    %29 = vector.broadcast %cst_15 : f32 to vector<16x1xf32>
    %30 = arith.addf %26, %29 : vector<16x1xf32>
    %31 = math.rsqrt %30 : vector<16x1xf32>
    %32 = vector.broadcast %31 : vector<16x1xf32> to vector<16x32xf32>
    %33 = arith.mulf %28, %32 : vector<16x32xf32>
    %c0_16 = arith.constant 0 : index
    %c0_17 = arith.constant 0 : index
    %34 = vector.load %arg6[%c0_16, %c0_17] : memref<1x32xf32, #tpu.memory_space<vmem>>, vector<1x32xf32>
    %35 = vector.broadcast %34 : vector<1x32xf32> to vector<16x32xf32>
    %36 = arith.mulf %33, %35 : vector<16x32xf32>
    %c0_18 = arith.constant 0 : index
    %c0_19 = arith.constant 0 : index
    %37 = vector.load %arg7[%c0_18, %c0_19] : memref<1x32xf32, #tpu.memory_space<vmem>>, vector<1x32xf32>
    %38 = vector.broadcast %37 : vector<1x32xf32> to vector<16x32xf32>
    %39 = arith.addf %36, %38 : vector<16x32xf32>
    %40 = arith.truncf %39 : vector<16x32xf32> to vector<16x32xbf16>
    %c0_20 = arith.constant 0 : index
    %c0_21 = arith.constant 0 : index
    %41 = vector.load %arg8[%c0_20, %c0_21] : memref<16x32xbf16, #tpu.memory_space<vmem>>, vector<16x32xbf16>
    tpu.vector_store %arg8[%c0_20, %c0_21], %40 {strides = array<i32>} : memref<16x32xbf16, #tpu.memory_space<vmem>>, vector<16x32xbf16>,
    return
  }
  func.func @transform_0(%arg0: i32) -> (i32, i32) {
    %c0_i32 = arith.constant 0 : i32
    %c0_i32_0 = arith.constant 0 : i32
    return %arg0, %c0_i32 : i32, i32
  }
  func.func @transform_1(%arg0: i32) -> (i32, i32) {
    %c0_i32 = arith.constant 0 : i32
    %c0_i32_0 = arith.constant 0 : i32
    %c0_i32_1 = arith.constant 0 : i32
    return %c0_i32, %c0_i32_0 : i32, i32
  }
  func.func @transform_2(%arg0: i32) -> (i32, i32) {
    %c0_i32 = arith.constant 0 : i32
    %c0_i32_0 = arith.constant 0 : i32
    %c0_i32_1 = arith.constant 0 : i32
    return %c0_i32, %c0_i32_0 : i32, i32
  }
  func.func @transform_3(%arg0: i32) -> (i32, i32) {
    %c0_i32 = arith.constant 0 : i32
    %c0_i32_0 = arith.constant 0 : i32
    %c0_i32_1 = arith.constant 0 : i32
    return %c0_i32, %c0_i32_0 : i32, i32
  }
  func.func @transform_4(%arg0: i32) -> (i32, i32) {
    %c0_i32 = arith.constant 0 : i32
    %c0_i32_0 = arith.constant 0 : i32
    %c0_i32_1 = arith.constant 0 : i32
    return %c0_i32, %c0_i32_0 : i32, i32
  }
  func.func @transform_5(%arg0: i32) -> (i32, i32) {
    %c0_i32 = arith.constant 0 : i32
    %c0_i32_0 = arith.constant 0 : i32
    %c0_i32_1 = arith.constant 0 : i32
    return %c0_i32, %c0_i32_0 : i32, i32
  }
  func.func @transform_6(%arg0: i32) -> (i32, i32) {
    %c0_i32 = arith.constant 0 : i32
    %c0_i32_0 = arith.constant 0 : i32
    %c0_i32_1 = arith.constant 0 : i32
    return %c0_i32, %c0_i32_0 : i32, i32
  }
  func.func @transform_7(%arg0: i32) -> (i32, i32) {
    %c0_i32 = arith.constant 0 : i32
    %c0_i32_0 = arith.constant 0 : i32
    return %arg0, %c0_i32 : i32, i32
  }
}

</mosaic_0001>

<llo_original>
// kernel: encoder_forward.7
$region0: #{encoder_forward.7}
  #allocation0 [shape = 'u32[]', space=smem, size = 0x4, offset = 0x4, fixed_abs, tag = 'smem constant byte address 0x4 - core index']
  #allocation1 [shape = 'u32[144,128]{1,0:T(1,128)}', space=vmem, size = 0x12000, scoped, tag = 'internal scratch']
  %s0 = inlined_call_operand.vmem [shape: bf16[16,32], index: 0, kind: input, shape index: {}]
  %s1 = inlined_call_operand.vmem [shape: bf16[32,32], index: 1, kind: input, shape index: {}]
  %s2 = inlined_call_operand.vmem [shape: f32[1,32], index: 2, kind: input, shape index: {}]
  %s3 = inlined_call_operand.vmem [shape: bf16[16,32], index: 3, kind: input, shape index: {}]
  %s4 = inlined_call_operand.vmem [shape: f32[1,32], index: 4, kind: input, shape index: {}]
  %s5 = inlined_call_operand.vmem [shape: f32[1,32], index: 5, kind: input, shape index: {}]
  %s6 = inlined_call_operand.vmem [shape: bf16[16,32], index: 6, kind: output, shape index: {}]
  %s7 = sld [smem:[#allocation0]]
  $region34: #{encoder_forward.7} parent=0
    _
  %s9 = ssub.s32 1, %s7
  %s10 = scalar_select 0, %s9, %s7
  // Predicated region
  $region2: #{encoder_forward.7} parent=0 // pred_check
    _
  $region3: #{encoder_forward.7} parent=0 // pred_check_branch
    %12 = sbr.rel (0) target = $region5
  $region4: #{encoder_forward.7} parent=0 // pred_region
    _
  $region5: #{encoder_forward.7} parent=0 // pred_fallthru
    _
  // Predicated region
  $region6: #{encoder_forward.7} parent=0 // pred_check
    _
  $region7: #{encoder_forward.7} parent=0 // pred_check_branch
    %14 = sbr.rel (0) target = $region9
  $region8: #{encoder_forward.7} parent=0 // pred_region
    _
  $region9: #{encoder_forward.7} parent=0 // pred_fallthru
    _
  // Predicated region
  $region10: #{encoder_forward.7} parent=0 // pred_check
    _
  $region11: #{encoder_forward.7} parent=0 // pred_check_branch
    %16 = sbr.rel (0) target = $region13
  $region12: #{encoder_forward.7} parent=0 // pred_region
    _
  $region13: #{encoder_forward.7} parent=0 // pred_fallthru
    _
  // Predicated region
  $region14: #{encoder_forward.7} parent=0 // pred_check
    _
  $region15: #{encoder_forward.7} parent=0 // pred_check_branch
    %18 = sbr.rel (0) target = $region17
  $region16: #{encoder_forward.7} parent=0 // pred_region
    _
  $region17: #{encoder_forward.7} parent=0 // pred_fallthru
    _
  // Predicated region
  $region18: #{encoder_forward.7} parent=0 // pred_check
    _
  $region19: #{encoder_forward.7} parent=0 // pred_check_branch
    %20 = sbr.rel (0) target = $region21
  $region20: #{encoder_forward.7} parent=0 // pred_region
    _
  $region21: #{encoder_forward.7} parent=0 // pred_fallthru
    _
  // Predicated region
  $region22: #{encoder_forward.7} parent=0 // pred_check
    _
  $region23: #{encoder_forward.7} parent=0 // pred_check_branch
    %22 = sbr.rel (0) target = $region25
  $region24: #{encoder_forward.7} parent=0 // pred_region
    _
  $region25: #{encoder_forward.7} parent=0 // pred_fallthru
    _
  %v24 = vld [vmem:[%s0] sm:$0xf]
  %v25 = vld [vmem:[%s0 + $0x4] sm:$0xf]
  %v26 = vld [vmem:[%s1] sm:$0xf]
  %v27 = vld [vmem:[%s1 + $0x4] sm:$0xf]
  %v28 = vld [vmem:[%s1 + $0x8] sm:$0xf]
  %v29 = vld [vmem:[%s1 + $0xc] sm:$0xf]
  %v30 = vld [vmem:[%s2] sm:$0x1]
  %v32 = vlaneseq
  %v33 = vshrl.u32 %v32, 7
  %v34 = vsub.s32 0, %v33
  %v35 = vrot.slane %v30, %v34
  %v39 = vunpack.c.l.b16 %v24
  %v40 = vunpack.c.l.b16 %v25
  %v41 = vpack.c.b16 %v40, %v39
  %v46 = vunpack.c.l.b16 %v26
  %v47 = vunpack.c.l.b16 %v27
  %v48 = vunpack.c.l.b16 %v28
  %v49 = vunpack.c.l.b16 %v29
  %v50 = vpack.c.b16 %v47, %v46
  %v51 = vpack.c.b16 %v49, %v48
  %vm54 = vcmask 261120
  %v56 = vsel %vm54, %v41, 0
  %58 = vmatprep.subr.bf16.mxu0 0
  %59 = vmatpush1.bf16.msra.mxu0 %v50
  %60 = vmatprep.subr.bf16.mxu0 0
  %61 = vmatpush1.bf16.msra.mxu0 %v51
  %62 = vmatprep.subr.bf16.mxu0 0
  %63 = vmatpush1.bf16.msra.mxu0 0
  %64 = vmatprep.subr.bf16.mxu0 0
  %65 = vmatpush1.bf16.msra.mxu0 0
  %66 = vmatprep.subr.bf16.mxu0 0
  %67 = vmatpush1.bf16.msra.mxu0 0
  %68 = vmatprep.subr.bf16.mxu0 0
  %69 = vmatpush1.bf16.msra.mxu0 0
  %70 = vmatprep.subr.bf16.mxu0 0
  %71 = vmatpush1.bf16.msra.mxu0 0
  %72 = vmatprep.subr.bf16.mxu0 0
  %73 = vmatpush1.bf16.msra.mxu0 0
  %74 = vmatprep.subr.bf16.mxu0 0
  %75 = vmatpush1.bf16.msra.mxu0 0
  %76 = vmatprep.subr.bf16.mxu0 0
  %77 = vmatpush1.bf16.msra.mxu0 0
  %78 = vmatprep.subr.bf16.mxu0 0
  %79 = vmatpush1.bf16.msra.mxu0 0
  %80 = vmatprep.subr.bf16.mxu0 0
  %81 = vmatpush1.bf16.msra.mxu0 0
  %82 = vmatprep.subr.bf16.mxu0 0
  %83 = vmatpush1.bf16.msra.mxu0 0
  %84 = vmatprep.subr.bf16.mxu0 0
  %85 = vmatpush1.bf16.msra.mxu0 0
  %86 = vmatprep.subr.bf16.mxu0 0
  %87 = vmatpush1.bf16.msra.mxu0 0
  %88 = vmatprep.subr.bf16.mxu0 0
  %89 = vmatpush1.bf16.msra.mxu0 0
  %90 = vmatprep.mubr.bf16.mxu0 0
  %91 = vmatmul.mubr.bf16.gmra.mrb[0].mxu0 %v56
  %v92 = vpop.f32.mrb[0].mxu0
  %v93 = vadd.f32 %v35, %v92
  %v94 = vpop.f32.mrb[0].mxu0
  %v95 = vpop.f32.mrb[0].mxu0
  %v96 = vadd.f32 %v35, %v95
  %v97 = vpop.f32.mrb[0].mxu0
  %98 = vdwg.mxu0
  %v99 = vld [vmem:[%s3] sm:$0xf]
  %v100 = vld [vmem:[%s3 + $0x4] sm:$0xf]
  %v101 = vunpack.c.l.bf16 %v99
  %v102 = vunpack.c.l.bf16 %v100
  %v103 = vadd.f32 %v101, %v93
  %v104 = vadd.f32 %v102, %v96
  %v105 = vsel %vm54, %v103, 0.0
  %106 = vadd.xlane.f32.xlu0 %v105
  %v107 = vpop.xlane.xlu0 %106
  %v108 = vsel %vm54, %v104, 0.0
  %109 = vadd.xlane.f32.xlu0 %v108
  %v110 = vpop.xlane.xlu0 %109
  %v111 = vrcp.pop 32.0
  %v112 = vmul.f32 %v107, %v111
  %v113 = vmul.f32 %v110, %v111
  %v114 = vsub.f32 %v103, %v112
  %v115 = vsub.f32 %v104, %v113
  %v116 = vmul.f32 %v114, %v114
  %v117 = vmul.f32 %v115, %v115
  %v118 = vsel %vm54, %v116, 0.0
  %119 = vadd.xlane.f32.xlu0 %v118
  %v120 = vpop.xlane.xlu0 %119
  %v121 = vsel %vm54, %v117, 0.0
  %122 = vadd.xlane.f32.xlu0 %v121
  %v123 = vpop.xlane.xlu0 %122
  %v124 = vmul.f32 %v120, %v111
  %v125 = vmul.f32 %v123, %v111
  %v126 = vadd.f32 %v124, 1e-05
  %v127 = vadd.f32 %v125, 1e-05
  %v128 = vrsqrt.pop %v126
  %v129 = vrsqrt.pop %v127
  %v130 = vmul.f32 %v114, %v128
  %v131 = vmul.f32 %v115, %v129
  %v132 = vld [vmem:[%s4] sm:$0x1]
  %v134 = vlaneseq
  %v135 = vshrl.u32 %v134, 7
  %v136 = vsub.s32 0, %v135
  %v137 = vrot.slane %v132, %v136
  %v139 = vmul.f32 %v130, %v137
  %v140 = vmul.f32 %v131, %v137
  %v141 = vld [vmem:[%s5] sm:$0x1]
  %v143 = vlaneseq
  %v144 = vshrl.u32 %v143, 7
  %v145 = vsub.s32 0, %v144
  %v146 = vrot.slane %v141, %v145
  %v148 = vadd.f32 %v139, %v146
  %v149 = vadd.f32 %v140, %v146
  %v150 = vpack.c.bf16 %v149, %v148
  %v152 = vunpack.c.l.b16 %v150
  %v153 = vunpack.c.h.b16 %v150
  %v154 = vpack.c.b16 %v152, %v152
  %v155 = vpack.c.b16 %v153, %v153
  %vm158 = vcmask 257024
  %159 = vst.msk [vmem:[%s6] sm:$0xf] %vm158, %v154
  %160 = vst.msk [vmem:[%s6 + $0x4] sm:$0xf] %vm158, %v155
  // Predicated region
  $region26: #{encoder_forward.7} parent=0 // pred_check
    _
  $region27: #{encoder_forward.7} parent=0 // pred_check_branch
    %162 = sbr.rel (0) target = $region29
  $region28: #{encoder_forward.7} parent=0 // pred_region
    _
  $region29: #{encoder_forward.7} parent=0 // pred_fallthru
    _
  // Predicated region
  $region30: #{encoder_forward.7} parent=0 // pred_check
    _
  $region31: #{encoder_forward.7} parent=0 // pred_check_branch
    %164 = sbr.rel (0) target = $region33
  $region32: #{encoder_forward.7} parent=0 // pred_region
    _
  $region33: #{encoder_forward.7} parent=0 // pred_fallthru
    _

// kernel: encoder_forward.6
$region0: #{encoder_forward.6}
  #allocation0 [shape = 'u32[]', space=smem, size = 0x4, offset = 0x4, fixed_abs, tag = 'smem constant byte address 0x4 - core index']
  #allocation1 [shape = 'u32[144,128]{1,0:T(1,128)}', space=vmem, size = 0x12000, scoped, tag = 'internal scratch']
  %s0 = inlined_call_operand.vmem [shape: bf16[2,8,32], index: 0, kind: input, shape index: {}]
  %s1 = inlined_call_operand.vmem [shape: bf16[32,96], index: 1, kind: input, shape index: {}]
  %s2 = inlined_call_operand.vmem [shape: f32[1,96], index: 2, kind: input, shape index: {}]
  %s3 = inlined_call_operand.vmem [shape: f32[2,1,8], index: 3, kind: input, shape index: {}]
  %s4 = inlined_call_operand.vmem [shape: bf16[2,8,32], index: 4, kind: output, shape index: {}]
  %s5 = sld [smem:[#allocation0]]
  $region49: #{encoder_forward.6} parent=0
    _
  %s7 = ssub.s32 1, %s5
  %s8 = scalar_select 0, %s7, %s5
  loop: start=0, step=1, limit=4
  $region2: #{encoder_forward.6} parent=0 // loop_pre_header
    _
  $region3: #{encoder_forward.6} parent=0 // loop_header
    %s10 = sphi 0, %s14
    %p11 = scmp.ge.s32.totalorder %s10, 4
    %s20 = sphi 0, %s22
    %s23 = sphi 0, %s20
    %s24 = sphi 0, %s23
    %s40 = sphi 0, %s24
    %s44 = sphi 0, %s44
    %s46 = sphi 0, %s44
    %s47 = sphi 0, %s46
    %s61 = sphi 0, %s47
    %s65 = sphi 0, %s65
    %s67 = sphi 0, %s65
    %s68 = sphi 0, %s67
    %s82 = sphi 0, %s68
    %s88 = sphi 0, %s90
    %s91 = sphi 0, %s88
    %s92 = sphi 0, %s91
    %s108 = sphi 0, %s92
    %s114 = sphi 0, %s116
    %s117 = sphi 0, %s114
    %s118 = sphi 0, %s117
    %s134 = sphi 0, %s118
  $region4: #{encoder_forward.6} parent=0 // loop_header_branch
    %13 = sbr.rel (%p11) target = $region8
  $region5: #{encoder_forward.6} parent=0 // loop_body
    %s15 = ssub.s32 %s10, 1
    %s16 = ssub.s32 %s10, 2
    %s17 = sadd.s32 %s10, 1
    %s18 = ssub.s32 %s10, %s17
    %p19 = scmp.eq.s32.totalorder %s18, 0
    %s21 = sadd.s32 %s20, 1
    %s22 = scalar_select %p19, %s20, %s21
    %p25 = pneg %p19
    %p26 = scmp.eq.s32.totalorder %s10, 1
    %p27 = por %p25, %p26
    %p28 = scmp.ne.s32.totalorder %s20, %s23
    %p29 = scmp.eq.s32.totalorder %s10, 0
    %p30 = por %p28, %p29
    %p31 = scmp.ne.s32.totalorder %s20, %s23
    %p32 = scmp.eq.s32.totalorder %s15, 1
    %p33 = por %p31, %p32
    %p34 = scmp.ne.s32.totalorder %s23, %s24
    %p35 = scmp.eq.s32.totalorder %s15, 0
    %p36 = por %p34, %p35
    %p37 = scmp.ne.s32.totalorder %s23, %s24
    %p38 = scmp.eq.s32.totalorder %s16, 1
    %p39 = por %p37, %p38
    %p41 = scmp.ne.s32.totalorder %s24, %s40
    %p42 = scmp.eq.s32.totalorder %s16, 0
    %p43 = por %p41, %p42
    %s45 = sadd.s32 %s44, 1
    %p48 = scmp.eq.s32.totalorder %s10, 1
    %p49 = scmp.ne.s32.totalorder %s44, %s46
    %p50 = scmp.eq.s32.totalorder %s10, 0
    %p51 = por %p49, %p50
    %p52 = scmp.ne.s32.totalorder %s44, %s46
    %p53 = scmp.eq.s32.totalorder %s15, 1
    %p54 = por %p52, %p53
    %p55 = scmp.ne.s32.totalorder %s46, %s47
    %p56 = scmp.eq.s32.totalorder %s15, 0
    %p57 = por %p55, %p56
    %p58 = scmp.ne.s32.totalorder %s46, %s47
    %p59 = scmp.eq.s32.totalorder %s16, 1
    %p60 = por %p58, %p59
    %p62 = scmp.ne.s32.totalorder %s47, %s61
    %p63 = scmp.eq.s32.totalorder %s16, 0
    %p64 = por %p62, %p63
    %s66 = sadd.s32 %s65, 1
    %p69 = scmp.eq.s32.totalorder %s10, 1
    %p70 = scmp.ne.s32.totalorder %s65, %s67
    %p71 = scmp.eq.s32.totalorder %s10, 0
    %p72 = por %p70, %p71
    %p73 = scmp.ne.s32.totalorder %s65, %s67
    %p74 = scmp.eq.s32.totalorder %s15, 1
    %p75 = por %p73, %p74
    %p76 = scmp.ne.s32.totalorder %s67, %s68
    %p77 = scmp.eq.s32.totalorder %s15, 0
    %p78 = por %p76, %p77
    %p79 = scmp.ne.s32.totalorder %s67, %s68
    %p80 = scmp.eq.s32.totalorder %s16, 1
    %p81 = por %p79, %p80
    %p83 = scmp.ne.s32.totalorder %s68, %s82
    %p84 = scmp.eq.s32.totalorder %s16, 0
    %p85 = por %p83, %p84
    %s86 = ssub.s32 %s10, %s17
    %p87 = scmp.eq.s32.totalorder %s86, 0
    %s89 = sadd.s32 %s88, 1
    %s90 = scalar_select %p87, %s88, %s89
    %p93 = pneg %p87
    %p94 = scmp.eq.s32.totalorder %s10, 1
    %p95 = por %p93, %p94
    %p96 = scmp.ne.s32.totalorder %s88, %s91
    %p97 = scmp.eq.s32.totalorder %s10, 0
    %p98 = por %p96, %p97
    %p99 = scmp.ne.s32.totalorder %s88, %s91
    %p100 = scmp.eq.s32.totalorder %s15, 1
    %p101 = por %p99, %p100
    %p102 = scmp.ne.s32.totalorder %s91, %s92
    %p103 = scmp.eq.s32.totalorder %s15, 0
    %p104 = por %p102, %p103
    %p105 = scmp.ne.s32.totalorder %s91, %s92
    %p106 = scmp.eq.s32.totalorder %s16, 1
    %p107 = por %p105, %p106
    %p109 = scmp.ne.s32.totalorder %s92, %s108
    %p110 = scmp.eq.s32.totalorder %s16, 0
    %p111 = por %p109, %p110
    %s112 = ssub.s32 %s10, %s17
    %p113 = scmp.eq.s32.totalorder %s112, 0
    %s115 = sadd.s32 %s114, 1
    %s116 = scalar_select %p113, %s114, %s115
    %p119 = pneg %p113
    %p120 = scmp.eq.s32.totalorder %s10, 1
    %p121 = por %p119, %p120
    %p122 = scmp.ne.s32.totalorder %s114, %s117
    %p123 = scmp.eq.s32.totalorder %s10, 0
    %p124 = por %p122, %p123
    %p125 = scmp.ne.s32.totalorder %s114, %s117
    %p126 = scmp.eq.s32.totalorder %s15, 1
    %p127 = por %p125, %p126
    %p128 = scmp.ne.s32.totalorder %s117, %s118
    %p129 = scmp.eq.s32.totalorder %s15, 0
    %p130 = por %p128, %p129
    %p131 = scmp.ne.s32.totalorder %s117, %s118
    %p132 = scmp.eq.s32.totalorder %s16, 1
    %p133 = por %p131, %p132
    %p135 = scmp.ne.s32.totalorder %s118, %s134
    %p136 = scmp.eq.s32.totalorder %s16, 0
    %p137 = por %p135, %p136
    %p138 = scmp.le.s32.totalorder 1, %s10
    %p139 = scmp.lt.s32.totalorder %s10, 3
    %p140 = pnand %p138, %p139
    %p141 = pneg %p140
    // Predicated region
    $region9: #{encoder_forward.6} parent=5 // pred_check
      _
    $region10: #{encoder_forward.6} parent=5 // pred_check_branch
      %143 = sbr.rel (%p140) target = $region12
    $region11: #{encoder_forward.6} parent=5 // pred_region
      %s144 = ssub.s32 %s10, 1
      // Predicated region
      $region13: #{encoder_forward.6} parent=11 // pred_check
        %p145 = pneg %p57
      $region14: #{encoder_forward.6} parent=11 // pred_check_branch
        %147 = sbr.rel (%p145) target = $region16
      $region15: #{encoder_forward.6} parent=11 // pred_region
        _
      $region16: #{encoder_forward.6} parent=11 // pred_fallthru
        _
      // Predicated region
      $region17: #{encoder_forward.6} parent=11 // pred_check
        %p148 = pneg %p78
      $region18: #{encoder_forward.6} parent=11 // pred_check_branch
        %150 = sbr.rel (%p148) target = $region20
      $region19: #{encoder_forward.6} parent=11 // pred_region
        _
      $region20: #{encoder_forward.6} parent=11 // pred_fallthru
        _
    $region12: #{encoder_forward.6} parent=5 // pred_fallthru
      _
    %p151 = scmp.lt.s32.totalorder %s10, 2
    // Predicated region
    $region21: #{encoder_forward.6} parent=5 // pred_check
      %p152 = pneg %p151
    $region22: #{encoder_forward.6} parent=5 // pred_check_branch
      %154 = sbr.rel (%p152) target = $region24
    $region23: #{encoder_forward.6} parent=5 // pred_region
      // Predicated region
      $region25: #{encoder_forward.6} parent=23 // pred_check
        %p155 = pneg %p30
      $region26: #{encoder_forward.6} parent=23 // pred_check_branch
        %157 = sbr.rel (%p155) target = $region28
      $region27: #{encoder_forward.6} parent=23 // pred_region
        %p158 = scmp.lt.s32.totalorder %s10, 1
        %s159 = scalar_select %p158, %s10, 1
        %s160 = smul.addr %s159, 4
        %s161 = scalar_lea.vmem %s0, %s160
      $region28: #{encoder_forward.6} parent=23 // pred_fallthru
        _
      // Predicated region
      $region29: #{encoder_forward.6} parent=23 // pred_check
        %p162 = pneg %p98
      $region30: #{encoder_forward.6} parent=23 // pred_check_branch
        %164 = sbr.rel (%p162) target = $region32
      $region31: #{encoder_forward.6} parent=23 // pred_region
        %p165 = scmp.lt.s32.totalorder %s10, 1
        %s166 = scalar_select %p165, %s10, 1
        %s167 = scalar_lea.vmem %s3, %s166
      $region32: #{encoder_forward.6} parent=23 // pred_fallthru
        _
    $region24: #{encoder_forward.6} parent=5 // pred_fallthru
      _
    %p168 = scmp.le.s32.totalorder 1, %s10
    %p169 = scmp.lt.s32.totalorder %s10, 3
    %p170 = pnand %p168, %p169
    %p171 = pneg %p170
    // Predicated region
    $region33: #{encoder_forward.6} parent=5 // pred_check
      _
    $region34: #{encoder_forward.6} parent=5 // pred_check_branch
      %173 = sbr.rel (%p170) target = $region36
    $region35: #{encoder_forward.6} parent=5 // pred_region
      %s174 = ssub.s32 %s10, 1
      %p175 = scmp.lt.s32.totalorder %s15, 1
      %s176 = scalar_select %p175, %s15, 1
      %s177 = smul.addr %s176, 4
      %s178 = scalar_lea.vmem %s0, %s177
      %p179 = pneg %p36
      %p180 = pneg %p33
      %p181 = pneg %p57
      %p182 = pneg %p54
      %p183 = pneg %p78
      %p184 = pneg %p75
      %p185 = scmp.lt.s32.totalorder %s15, 1
      %s186 = scalar_select %p185, %s15, 1
      %s187 = scalar_lea.vmem %s3, %s186
      %p188 = pneg %p104
      %p189 = pneg %p101
      %p190 = pneg %p130
      %p191 = pneg %p127
      %p192 = scmp.lt.s32.totalorder %s15, 1
      %s193 = scalar_select %p192, %s15, 1
      %s194 = smul.addr %s193, 4
      %s195 = scalar_lea.vmem %s4, %s194
      %p196 = scmp.lt.s32.totalorder %s15, 1
      %s197 = scalar_select %p196, %s15, 1
      %s198 = smul.addr %s197, 4
      %s199 = scalar_lea.vmem %s0, %s198
      %p200 = scmp.lt.s32.totalorder %s15, 1
      %s201 = scalar_select %p200, %s15, 1
      %s202 = scalar_lea.vmem %s3, %s201
      %p203 = scmp.lt.s32.totalorder %s15, 1
      %s204 = scalar_select %p203, %s15, 1
      %s205 = smul.addr %s204, 4
      %s206 = scalar_lea.vmem %s4, %s205
      %v208 = vld [vmem:[%s199] sm:$0xf]
      %v209 = vld [vmem:[%s1] sm:$0xf]
      %v210 = vld [vmem:[%s1 + $0x4] sm:$0xf]
      %v211 = vld [vmem:[%s1 + $0x8] sm:$0xf]
      %v212 = vld [vmem:[%s1 + $0xc] sm:$0xf]
      %v213 = vld [vmem:[%s2] sm:$0x1]
      %v215 = vlaneseq
      %v216 = vshrl.u32 %v215, 7
      %v217 = vsub.s32 0, %v216
      %v218 = vrot.slane %v213, %v217
      %v224 = vunpack.c.l.b16 %v209
      %v225 = vunpack.c.l.b16 %v210
      %v226 = vunpack.c.l.b16 %v211
      %v227 = vunpack.c.l.b16 %v212
      %v228 = vpack.c.b16 %v225, %v224
      %v229 = vpack.c.b16 %v227, %v226
      %vm232 = vcmask 261120
      %v234 = vsel %vm232, %v208, 0
      %236 = vmatprep.subr.bf16.mxu0 0
      %237 = vmatpush1.bf16.msra.mxu0 %v228
      %238 = vmatprep.subr.bf16.mxu0 0
      %239 = vmatpush1.bf16.msra.mxu0 %v229
      %240 = vmatprep.subr.bf16.mxu0 0
      %241 = vmatpush1.bf16.msra.mxu0 0
      %242 = vmatprep.subr.bf16.mxu0 0
      %243 = vmatpush1.bf16.msra.mxu0 0
      %244 = vmatprep.subr.bf16.mxu0 0
      %245 = vmatpush1.bf16.msra.mxu0 0
      %246 = vmatprep.subr.bf16.mxu0 0
      %247 = vmatpush1.bf16.msra.mxu0 0
      %248 = vmatprep.subr.bf16.mxu0 0
      %249 = vmatpush1.bf16.msra.mxu0 0
      %250 = vmatprep.subr.bf16.mxu0 0
      %251 = vmatpush1.bf16.msra.mxu0 0
      %252 = vmatprep.subr.bf16.mxu0 0
      %253 = vmatpush1.bf16.msra.mxu0 0
      %254 = vmatprep.subr.bf16.mxu0 0
      %255 = vmatpush1.bf16.msra.mxu0 0
      %256 = vmatprep.subr.bf16.mxu0 0
      %257 = vmatpush1.bf16.msra.mxu0 0
      %258 = vmatprep.subr.bf16.mxu0 0
      %259 = vmatpush1.bf16.msra.mxu0 0
      %260 = vmatprep.subr.bf16.mxu0 0
      %261 = vmatpush1.bf16.msra.mxu0 0
      %262 = vmatprep.subr.bf16.mxu0 0
      %263 = vmatpush1.bf16.msra.mxu0 0
      %264 = vmatprep.subr.bf16.mxu0 0
      %265 = vmatpush1.bf16.msra.mxu0 0
      %266 = vmatprep.subr.bf16.mxu0 0
      %267 = vmatpush1.bf16.msra.mxu0 0
      %268 = vmatprep.mubr.bf16.mxu0 0
      %269 = vmatmul.mubr.bf16.gmra.mrb[0].mxu0 %v234
      %v270 = vpop.f32.mrb[0].mxu0
      %v271 = vadd.f32 %v218, %v270
      %v272 = vpop.f32.mrb[0].mxu0
      %v273 = vpop.f32.mrb[0].mxu0
      %v274 = vpop.f32.mrb[0].mxu0
      %275 = vdwg.mxu0
      %v276 = vld [vmem:[%s202] sm:$0x1]
      %v277 = vpack.c.bf16 %v271, %v271
      %279 = vrot.lane.b32.xlu0 %v277, 96
      %v280 = vpop.permute.xlu0 %279
      %vm281 = vcmask 64512
      %v283 = vsel %vm281, %v277, 0
      %v286 = vsel %vm281, %v280, 0
      %288 = vmatprep.subr.bf16.mxu0 0
      %289 = vmatpush1.bf16.xpose.msra.mxu0 %v286
      %290 = vmatprep.subr.bf16.mxu0 0
      %291 = vmatpush1.bf16.xpose.msra.mxu0 0
      %292 = vmatprep.subr.bf16.mxu0 0
      %293 = vmatpush1.bf16.xpose.msra.mxu0 0
      %294 = vmatprep.subr.bf16.mxu0 0
      %295 = vmatpush1.bf16.xpose.msra.mxu0 0
      %296 = vmatprep.subr.bf16.mxu0 0
      %297 = vmatpush1.bf16.xpose.msra.mxu0 0
      %298 = vmatprep.subr.bf16.mxu0 0
      %299 = vmatpush1.bf16.xpose.msra.mxu0 0
      %300 = vmatprep.subr.bf16.mxu0 0
      %301 = vmatpush1.bf16.xpose.msra.mxu0 0
      %302 = vmatprep.subr.bf16.mxu0 0
      %303 = vmatpush1.bf16.xpose.msra.mxu0 0
      %304 = vmatprep.subr.bf16.mxu0 0
      %305 = vmatpush1.bf16.xpose.msra.mxu0 0
      %306 = vmatprep.subr.bf16.mxu0 0
      %307 = vmatpush1.bf16.xpose.msra.mxu0 0
      %308 = vmatprep.subr.bf16.mxu0 0
      %309 = vmatpush1.bf16.xpose.msra.mxu0 0
      %310 = vmatprep.subr.bf16.mxu0 0
      %311 = vmatpush1.bf16.xpose.msra.mxu0 0
      %312 = vmatprep.subr.bf16.mxu0 0
      %313 = vmatpush1.bf16.xpose.msra.mxu0 0
      %314 = vmatprep.subr.bf16.mxu0 0
      %315 = vmatpush1.bf16.xpose.msra.mxu0 0
      %316 = vmatprep.subr.bf16.mxu0 0
      %317 = vmatpush1.bf16.xpose.msra.mxu0 0
      %318 = vmatprep.subr.bf16.mxu0 0
      %319 = vmatpush1.bf16.xpose.msra.mxu0 0
      %320 = vmatprep.mubr.bf16.mxu0 0
      %321 = vmatmul.mubr.bf16.gmra.mrb[0].mxu0 %v283
      %v322 = vpop.f32.mrb[0].mxu0
      %v323 = vadd.f32 0.0, %v322
      %v324 = vpop.f32.mrb[0].mxu0
      %v325 = vpop.f32.mrb[0].mxu0
      %v326 = vpop.f32.mrb[0].mxu0
      %327 = vdwg.mxu0
      %v328 = vmul.f32 %v323, 0.35355338
      %v330 = vlaneseq
      %v331 = vshrl.u32 %v330, 7
      %v332 = vsub.s32 0, %v331
      %v333 = vrot.slane %v276, %v332
      %v335 = vadd.f32 %v328, %v333
      %v336 = vsel %vm281, %v335, -inf
      %337 = vmax.xlane.f32.xlu0 %v336
      %v338 = vpop.xlane.xlu0 %337
      %v339 = vsub.f32 %v335, %v338
      %v340 = vmul.f32 %v339, 1.442695
      %v341 = vpow.pop %v340
      %v342 = vsel %vm281, %v341, 0.0
      %343 = vadd.xlane.f32.xlu0 %v342
      %v344 = vpop.xlane.xlu0 %343
      %v345 = vrcp.pop %v344
      %v346 = vmul.f32 %v341, %v345
      %v347 = vpack.c.bf16 %v346, %v346
      %348 = vrot.lane.b32.xlu0 %v277, 64
      %v349 = vpop.permute.xlu0 %348
      %v351 = vsel %vm281, %v347, 0
      %vm353 = vcmask 1043456
      %v355 = vsel %vm353, %v349, 0
      %357 = vmatprep.subr.bf16.mxu0 0
      %358 = vmatpush1.bf16.msra.mxu0 %v355
      %359 = vmatprep.subr.bf16.mxu0 0
      %360 = vmatpush1.bf16.msra.mxu0 0
      %361 = vmatprep.subr.bf16.mxu0 0
      %362 = vmatpush1.bf16.msra.mxu0 0
      %363 = vmatprep.subr.bf16.mxu0 0
      %364 = vmatpush1.bf16.msra.mxu0 0
      %365 = vmatprep.subr.bf16.mxu0 0
      %366 = vmatpush1.bf16.msra.mxu0 0
      %367 = vmatprep.subr.bf16.mxu0 0
      %368 = vmatpush1.bf16.msra.mxu0 0
      %369 = vmatprep.subr.bf16.mxu0 0
      %370 = vmatpush1.bf16.msra.mxu0 0
      %371 = vmatprep.subr.bf16.mxu0 0
      %372 = vmatpush1.bf16.msra.mxu0 0
      %373 = vmatprep.subr.bf16.mxu0 0
      %374 = vmatpush1.bf16.msra.mxu0 0
      %375 = vmatprep.subr.bf16.mxu0 0
      %376 = vmatpush1.bf16.msra.mxu0 0
      %377 = vmatprep.subr.bf16.mxu0 0
      %378 = vmatpush1.bf16.msra.mxu0 0
      %379 = vmatprep.subr.bf16.mxu0 0
      %380 = vmatpush1.bf16.msra.mxu0 0
      %381 = vmatprep.subr.bf16.mxu0 0
      %382 = vmatpush1.bf16.msra.mxu0 0
      %383 = vmatprep.subr.bf16.mxu0 0
      %384 = vmatpush1.bf16.msra.mxu0 0
      %385 = vmatprep.subr.bf16.mxu0 0
      %386 = vmatpush1.bf16.msra.mxu0 0
      %387 = vmatprep.subr.bf16.mxu0 0
      %388 = vmatpush1.bf16.msra.mxu0 0
      %389 = vmatprep.mubr.bf16.mxu0 0
      %390 = vmatmul.mubr.bf16.gmra.mrb[0].mxu0 %v351
      %v391 = vpop.f32.mrb[0].mxu0
      %v392 = vadd.f32 0.0, %v391
      %v393 = vpop.f32.mrb[0].mxu0
      %v394 = vpop.f32.mrb[0].mxu0
      %v395 = vpop.f32.mrb[0].mxu0
      %396 = vdwg.mxu0
      %397 = vrot.lane.b32.xlu0 %v277, 120
      %v398 = vpop.permute.xlu0 %397
      %399 = vrot.lane.b32.xlu0 %v277, 88
      %v400 = vpop.permute.xlu0 %399
      %v402 = vsel %vm281, %v398, 0
      %v405 = vsel %vm281, %v400, 0
      %407 = vmatprep.subr.bf16.mxu0 0
      %408 = vmatpush1.bf16.xpose.msra.mxu0 %v405
      %409 = vmatprep.subr.bf16.mxu0 0
      %410 = vmatpush1.bf16.xpose.msra.mxu0 0
      %411 = vmatprep.subr.bf16.mxu0 0
      %412 = vmatpush1.bf16.xpose.msra.mxu0 0
      %413 = vmatprep.subr.bf16.mxu0 0
      %414 = vmatpush1.bf16.xpose.msra.mxu0 0
      %415 = vmatprep.subr.bf16.mxu0 0
      %416 = vmatpush1.bf16.xpose.msra.mxu0 0
      %417 = vmatprep.subr.bf16.mxu0 0
      %418 = vmatpush1.bf16.xpose.msra.mxu0 0
      %419 = vmatprep.subr.bf16.mxu0 0
      %420 = vmatpush1.bf16.xpose.msra.mxu0 0
      %421 = vmatprep.subr.bf16.mxu0 0
      %422 = vmatpush1.bf16.xpose.msra.mxu0 0
      %423 = vmatprep.subr.bf16.mxu0 0
      %424 = vmatpush1.bf16.xpose.msra.mxu0 0
      %425 = vmatprep.subr.bf16.mxu0 0
      %426 = vmatpush1.bf16.xpose.msra.mxu0 0
      %427 = vmatprep.subr.bf16.mxu0 0
      %428 = vmatpush1.bf16.xpose.msra.mxu0 0
      %429 = vmatprep.subr.bf16.mxu0 0
      %430 = vmatpush1.bf16.xpose.msra.mxu0 0
      %431 = vmatprep.subr.bf16.mxu0 0
      %432 = vmatpush1.bf16.xpose.msra.mxu0 0
      %433 = vmatprep.subr.bf16.mxu0 0
      %434 = vmatpush1.bf16.xpose.msra.mxu0 0
      %435 = vmatprep.subr.bf16.mxu0 0
      %436 = vmatpush1.bf16.xpose.msra.mxu0 0
      %437 = vmatprep.subr.bf16.mxu0 0
      %438 = vmatpush1.bf16.xpose.msra.mxu0 0
      %439 = vmatprep.mubr.bf16.mxu0 0
      %440 = vmatmul.mubr.bf16.gmra.mrb[0].mxu0 %v402
      %v441 = vpop.f32.mrb[0].mxu0
      %v442 = vadd.f32 0.0, %v441
      %v443 = vpop.f32.mrb[0].mxu0
      %v444 = vpop.f32.mrb[0].mxu0
      %v445 = vpop.f32.mrb[0].mxu0
      %446 = vdwg.mxu0
      %v447 = vmul.f32 %v442, 0.35355338
      %v448 = vadd.f32 %v447, %v333
      %v449 = vsel %vm281, %v448, -inf
      %450 = vmax.xlane.f32.xlu0 %v449
      %v451 = vpop.xlane.xlu0 %450
      %v452 = vsub.f32 %v448, %v451
      %v453 = vmul.f32 %v452, 1.442695
      %v454 = vpow.pop %v453
      %v455 = vsel %vm281, %v454, 0.0
      %456 = vadd.xlane.f32.xlu0 %v455
      %v457 = vpop.xlane.xlu0 %456
      %v458 = vrcp.pop %v457
      %v459 = vmul.f32 %v454, %v458
      %v460 = vpack.c.bf16 %v459, %v459
      %461 = vrot.lane.b32.xlu0 %v277, 56
      %v462 = vpop.permute.xlu0 %461
      %v464 = vsel %vm281, %v460, 0
      %v467 = vsel %vm353, %v462, 0
      %469 = vmatprep.subr.bf16.mxu0 0
      %470 = vmatpush1.bf16.msra.mxu0 %v467
      %471 = vmatprep.subr.bf16.mxu0 0
      %472 = vmatpush1.bf16.msra.mxu0 0
      %473 = vmatprep.subr.bf16.mxu0 0
      %474 = vmatpush1.bf16.msra.mxu0 0
      %475 = vmatprep.subr.bf16.mxu0 0
      %476 = vmatpush1.bf16.msra.mxu0 0
      %477 = vmatprep.subr.bf16.mxu0 0
      %478 = vmatpush1.bf16.msra.mxu0 0
      %479 = vmatprep.subr.bf16.mxu0 0
      %480 = vmatpush1.bf16.msra.mxu0 0
      %481 = vmatprep.subr.bf16.mxu0 0
      %482 = vmatpush1.bf16.msra.mxu0 0
      %483 = vmatprep.subr.bf16.mxu0 0
      %484 = vmatpush1.bf16.msra.mxu0 0
      %485 = vmatprep.subr.bf16.mxu0 0
      %486 = vmatpush1.bf16.msra.mxu0 0
      %487 = vmatprep.subr.bf16.mxu0 0
      %488 = vmatpush1.bf16.msra.mxu0 0
      %489 = vmatprep.subr.bf16.mxu0 0
      %490 = vmatpush1.bf16.msra.mxu0 0
      %491 = vmatprep.subr.bf16.mxu0 0
      %492 = vmatpush1.bf16.msra.mxu0 0
      %493 = vmatprep.subr.bf16.mxu0 0
      %494 = vmatpush1.bf16.msra.mxu0 0
      %495 = vmatprep.subr.bf16.mxu0 0
      %496 = vmatpush1.bf16.msra.mxu0 0
      %497 = vmatprep.subr.bf16.mxu0 0
      %498 = vmatpush1.bf16.msra.mxu0 0
      %499 = vmatprep.subr.bf16.mxu0 0
      %500 = vmatpush1.bf16.msra.mxu0 0
      %501 = vmatprep.mubr.bf16.mxu0 0
      %502 = vmatmul.mubr.bf16.gmra.mrb[0].mxu0 %v464
      %v503 = vpop.f32.mrb[0].mxu0
      %v504 = vadd.f32 0.0, %v503
      %v505 = vpop.f32.mrb[0].mxu0
      %v506 = vpop.f32.mrb[0].mxu0
      %v507 = vpop.f32.mrb[0].mxu0
      %508 = vdwg.mxu0
      %509 = vrot.lane.b32.xlu0 %v277, 112
      %v510 = vpop.permute.xlu0 %509
      %511 = vrot.lane.b32.xlu0 %v277, 80
      %v512 = vpop.permute.xlu0 %511
      %v514 = vsel %vm281, %v510, 0
      %v517 = vsel %vm281, %v512, 0
      %519 = vmatprep.subr.bf16.mxu0 0
      %520 = vmatpush1.bf16.xpose.msra.mxu0 %v517
      %521 = vmatprep.subr.bf16.mxu0 0
      %522 = vmatpush1.bf16.xpose.msra.mxu0 0
      %523 = vmatprep.subr.bf16.mxu0 0
      %524 = vmatpush1.bf16.xpose.msra.mxu0 0
      %525 = vmatprep.subr.bf16.mxu0 0
      %526 = vmatpush1.bf16.xpose.msra.mxu0 0
      %527 = vmatprep.subr.bf16.mxu0 0
      %528 = vmatpush1.bf16.xpose.msra.mxu0 0
      %529 = vmatprep.subr.bf16.mxu0 0
      %530 = vmatpush1.bf16.xpose.msra.mxu0 0
      %531 = vmatprep.subr.bf16.mxu0 0
      %532 = vmatpush1.bf16.xpose.msra.mxu0 0
      %533 = vmatprep.subr.bf16.mxu0 0
      %534 = vmatpush1.bf16.xpose.msra.mxu0 0
      %535 = vmatprep.subr.bf16.mxu0 0
      %536 = vmatpush1.bf16.xpose.msra.mxu0 0
      %537 = vmatprep.subr.bf16.mxu0 0
      %538 = vmatpush1.bf16.xpose.msra.mxu0 0
      %539 = vmatprep.subr.bf16.mxu0 0
      %540 = vmatpush1.bf16.xpose.msra.mxu0 0
      %541 = vmatprep.subr.bf16.mxu0 0
      %542 = vmatpush1.bf16.xpose.msra.mxu0 0
      %543 = vmatprep.subr.bf16.mxu0 0
      %544 = vmatpush1.bf16.xpose.msra.mxu0 0
      %545 = vmatprep.subr.bf16.mxu0 0
      %546 = vmatpush1.bf16.xpose.msra.mxu0 0
      %547 = vmatprep.subr.bf16.mxu0 0
      %548 = vmatpush1.bf16.xpose.msra.mxu0 0
      %549 = vmatprep.subr.bf16.mxu0 0
      %550 = vmatpush1.bf16.xpose.msra.mxu0 0
      %551 = vmatprep.mubr.bf16.mxu0 0
      %552 = vmatmul.mubr.bf16.gmra.mrb[0].mxu0 %v514
      %v553 = vpop.f32.mrb[0].mxu0
      %v554 = vadd.f32 0.0, %v553
      %v555 = vpop.f32.mrb[0].mxu0
      %v556 = vpop.f32.mrb[0].mxu0
      %v557 = vpop.f32.mrb[0].mxu0
      %558 = vdwg.mxu0
      %v559 = vmul.f32 %v554, 0.35355338
      %v560 = vadd.f32 %v559, %v333
      %v561 = vsel %vm281, %v560, -inf
      %562 = vmax.xlane.f32.xlu0 %v561
      %v563 = vpop.xlane.xlu0 %562
      %v564 = vsub.f32 %v560, %v563
      %v565 = vmul.f32 %v564, 1.442695
      %v566 = vpow.pop %v565
      %v567 = vsel %vm281, %v566, 0.0
      %568 = vadd.xlane.f32.xlu0 %v567
      %v569 = vpop.xlane.xlu0 %568
      %v570 = vrcp.pop %v569
      %v571 = vmul.f32 %v566, %v570
      %v572 = vpack.c.bf16 %v571, %v571
      %573 = vrot.lane.b32.xlu0 %v277, 48
      %v574 = vpop.permute.xlu0 %573
      %v576 = vsel %vm281, %v572, 0
      %v579 = vsel %vm353, %v574, 0
      %581 = vmatprep.subr.bf16.mxu0 0
      %582 = vmatpush1.bf16.msra.mxu0 %v579
      %583 = vmatprep.subr.bf16.mxu0 0
      %584 = vmatpush1.bf16.msra.mxu0 0
      %585 = vmatprep.subr.bf16.mxu0 0
      %586 = vmatpush1.bf16.msra.mxu0 0
      %587 = vmatprep.subr.bf16.mxu0 0
      %588 = vmatpush1.bf16.msra.mxu0 0
      %589 = vmatprep.subr.bf16.mxu0 0
      %590 = vmatpush1.bf16.msra.mxu0 0
      %591 = vmatprep.subr.bf16.mxu0 0
      %592 = vmatpush1.bf16.msra.mxu0 0
      %593 = vmatprep.subr.bf16.mxu0 0
      %594 = vmatpush1.bf16.msra.mxu0 0
      %595 = vmatprep.subr.bf16.mxu0 0
      %596 = vmatpush1.bf16.msra.mxu0 0
      %597 = vmatprep.subr.bf16.mxu0 0
      %598 = vmatpush1.bf16.msra.mxu0 0
      %599 = vmatprep.subr.bf16.mxu0 0
      %600 = vmatpush1.bf16.msra.mxu0 0
      %601 = vmatprep.subr.bf16.mxu0 0
      %602 = vmatpush1.bf16.msra.mxu0 0
      %603 = vmatprep.subr.bf16.mxu0 0
      %604 = vmatpush1.bf16.msra.mxu0 0
      %605 = vmatprep.subr.bf16.mxu0 0
      %606 = vmatpush1.bf16.msra.mxu0 0
      %607 = vmatprep.subr.bf16.mxu0 0
      %608 = vmatpush1.bf16.msra.mxu0 0
      %609 = vmatprep.subr.bf16.mxu0 0
      %610 = vmatpush1.bf16.msra.mxu0 0
      %611 = vmatprep.subr.bf16.mxu0 0
      %612 = vmatpush1.bf16.msra.mxu0 0
      %613 = vmatprep.mubr.bf16.mxu0 0
      %614 = vmatmul.mubr.bf16.gmra.mrb[0].mxu0 %v576
      %v615 = vpop.f32.mrb[0].mxu0
      %v616 = vadd.f32 0.0, %v615
      %v617 = vpop.f32.mrb[0].mxu0
      %v618 = vpop.f32.mrb[0].mxu0
      %v619 = vpop.f32.mrb[0].mxu0
      %620 = vdwg.mxu0
      %621 = vrot.lane.b32.xlu0 %v277, 104
      %v622 = vpop.permute.xlu0 %621
      %623 = vrot.lane.b32.xlu0 %v277, 72
      %v624 = vpop.permute.xlu0 %623
      %v626 = vsel %vm281, %v622, 0
      %v629 = vsel %vm281, %v624, 0
      %631 = vmatprep.subr.bf16.mxu0 0
      %632 = vmatpush1.bf16.xpose.msra.mxu0 %v629
      %633 = vmatprep.subr.bf16.mxu0 0
      %634 = vmatpush1.bf16.xpose.msra.mxu0 0
      %635 = vmatprep.subr.bf16.mxu0 0
      %636 = vmatpush1.bf16.xpose.msra.mxu0 0
      %637 = vmatprep.subr.bf16.mxu0 0
      %638 = vmatpush1.bf16.xpose.msra.mxu0 0
      %639 = vmatprep.subr.bf16.mxu0 0
      %640 = vmatpush1.bf16.xpose.msra.mxu0 0
      %641 = vmatprep.subr.bf16.mxu0 0
      %642 = vmatpush1.bf16.xpose.msra.mxu0 0
      %643 = vmatprep.subr.bf16.mxu0 0
      %644 = vmatpush1.bf16.xpose.msra.mxu0 0
      %645 = vmatprep.subr.bf16.mxu0 0
      %646 = vmatpush1.bf16.xpose.msra.mxu0 0
      %647 = vmatprep.subr.bf16.mxu0 0
      %648 = vmatpush1.bf16.xpose.msra.mxu0 0
      %649 = vmatprep.subr.bf16.mxu0 0
      %650 = vmatpush1.bf16.xpose.msra.mxu0 0
      %651 = vmatprep.subr.bf16.mxu0 0
      %652 = vmatpush1.bf16.xpose.msra.mxu0 0
      %653 = vmatprep.subr.bf16.mxu0 0
      %654 = vmatpush1.bf16.xpose.msra.mxu0 0
      %655 = vmatprep.subr.bf16.mxu0 0
      %656 = vmatpush1.bf16.xpose.msra.mxu0 0
      %657 = vmatprep.subr.bf16.mxu0 0
      %658 = vmatpush1.bf16.xpose.msra.mxu0 0
      %659 = vmatprep.subr.bf16.mxu0 0
      %660 = vmatpush1.bf16.xpose.msra.mxu0 0
      %661 = vmatprep.subr.bf16.mxu0 0
      %662 = vmatpush1.bf16.xpose.msra.mxu0 0
      %663 = vmatprep.mubr.bf16.mxu0 0
      %664 = vmatmul.mubr.bf16.gmra.mrb[0].mxu0 %v626
      %v665 = vpop.f32.mrb[0].mxu0
      %v666 = vadd.f32 0.0, %v665
      %v667 = vpop.f32.mrb[0].mxu0
      %v668 = vpop.f32.mrb[0].mxu0
      %v669 = vpop.f32.mrb[0].mxu0
      %670 = vdwg.mxu0
      %v671 = vmul.f32 %v666, 0.35355338
      %v672 = vadd.f32 %v671, %v333
      %v673 = vsel %vm281, %v672, -inf
      %674 = vmax.xlane.f32.xlu0 %v673
      %v675 = vpop.xlane.xlu0 %674
      %v676 = vsub.f32 %v672, %v675
      %v677 = vmul.f32 %v676, 1.442695
      %v678 = vpow.pop %v677
      %v679 = vsel %vm281, %v678, 0.0
      %680 = vadd.xlane.f32.xlu0 %v679
      %v681 = vpop.xlane.xlu0 %680
      %v682 = vrcp.pop %v681
      %v683 = vmul.f32 %v678, %v682
      %v684 = vpack.c.bf16 %v683, %v683
      %685 = vrot.lane.b32.xlu0 %v277, 40
      %v686 = vpop.permute.xlu0 %685
      %v688 = vsel %vm281, %v684, 0
      %v691 = vsel %vm353, %v686, 0
      %693 = vmatprep.subr.bf16.mxu0 0
      %694 = vmatpush1.bf16.msra.mxu0 %v691
      %695 = vmatprep.subr.bf16.mxu0 0
      %696 = vmatpush1.bf16.msra.mxu0 0
      %697 = vmatprep.subr.bf16.mxu0 0
      %698 = vmatpush1.bf16.msra.mxu0 0
      %699 = vmatprep.subr.bf16.mxu0 0
      %700 = vmatpush1.bf16.msra.mxu0 0
      %701 = vmatprep.subr.bf16.mxu0 0
      %702 = vmatpush1.bf16.msra.mxu0 0
      %703 = vmatprep.subr.bf16.mxu0 0
      %704 = vmatpush1.bf16.msra.mxu0 0
      %705 = vmatprep.subr.bf16.mxu0 0
      %706 = vmatpush1.bf16.msra.mxu0 0
      %707 = vmatprep.subr.bf16.mxu0 0
      %708 = vmatpush1.bf16.msra.mxu0 0
      %709 = vmatprep.subr.bf16.mxu0 0
      %710 = vmatpush1.bf16.msra.mxu0 0
      %711 = vmatprep.subr.bf16.mxu0 0
      %712 = vmatpush1.bf16.msra.mxu0 0
      %713 = vmatprep.subr.bf16.mxu0 0
      %714 = vmatpush1.bf16.msra.mxu0 0
      %715 = vmatprep.subr.bf16.mxu0 0
      %716 = vmatpush1.bf16.msra.mxu0 0
      %717 = vmatprep.subr.bf16.mxu0 0
      %718 = vmatpush1.bf16.msra.mxu0 0
      %719 = vmatprep.subr.bf16.mxu0 0
      %720 = vmatpush1.bf16.msra.mxu0 0
      %721 = vmatprep.subr.bf16.mxu0 0
      %722 = vmatpush1.bf16.msra.mxu0 0
      %723 = vmatprep.subr.bf16.mxu0 0
      %724 = vmatpush1.bf16.msra.mxu0 0
      %725 = vmatprep.mubr.bf16.mxu0 0
      %726 = vmatmul.mubr.bf16.gmra.mrb[0].mxu0 %v688
      %v727 = vpop.f32.mrb[0].mxu0
      %v728 = vadd.f32 0.0, %v727
      %v729 = vpop.f32.mrb[0].mxu0
      %v730 = vpop.f32.mrb[0].mxu0
      %v731 = vpop.f32.mrb[0].mxu0
      %732 = vdwg.mxu0
      %734 = vrot.lane.b32.xlu0 %v504, 8
      %v735 = vpop.permute.xlu0 %734
      %738 = vrot.lane.b32.xlu0 %v616, 16
      %v739 = vpop.permute.xlu0 %738
      %742 = vrot.lane.b32.xlu0 %v728, 24
      %v743 = vpop.permute.xlu0 %742
      %v745 = vsel %vm281, %v392, %v735
      %vm746 = vcmask 130048
      %v747 = vsel %vm746, %v745, %v739
      %vm748 = vcmask 195584
      %v749 = vsel %vm748, %v747, %v743
      %v750 = vpack.c.bf16 %v749, %v749
      %vm751 = vcmask 257024
      %752 = vst.msk [vmem:[%s206] sm:$0xf] %vm751, %v750
      %p753 = scmp.lt.s32.totalorder %s15, 1
      %s754 = scalar_select %p753, %s15, 1
      %s755 = smul.addr %s754, 4
      %s756 = scalar_lea.vmem %s4, %s755
      // Predicated region
      $region37: #{encoder_forward.6} parent=35 // pred_check
        %p757 = pneg %p127
      $region38: #{encoder_forward.6} parent=35 // pred_check_branch
        %759 = sbr.rel (%p757) target = $region40
      $region39: #{encoder_forward.6} parent=35 // pred_region
        _
      $region40: #{encoder_forward.6} parent=35 // pred_fallthru
        _
    $region36: #{encoder_forward.6} parent=5 // pred_fallthru
      _
    %p760 = scmp.le.s32.totalorder 2, %s10
    // Predicated region
    $region41: #{encoder_forward.6} parent=5 // pred_check
      %p761 = pneg %p760
    $region42: #{encoder_forward.6} parent=5 // pred_check_branch
      %763 = sbr.rel (%p761) target = $region44
    $region43: #{encoder_forward.6} parent=5 // pred_region
      %s764 = ssub.s32 %s10, 2
      // Predicated region
      $region45: #{encoder_forward.6} parent=43 // pred_check
        %p765 = pneg %p133
      $region46: #{encoder_forward.6} parent=43 // pred_check_branch
        %767 = sbr.rel (%p765) target = $region48
      $region47: #{encoder_forward.6} parent=43 // pred_region
        %p768 = scmp.lt.s32.totalorder %s16, 1
        %s769 = scalar_select %p768, %s16, 1
        %s770 = smul.addr %s769, 4
        %s771 = scalar_lea.vmem %s4, %s770
      $region48: #{encoder_forward.6} parent=43 // pred_fallthru
        _
    $region44: #{encoder_forward.6} parent=5 // pred_fallthru
      _
  $region6: #{encoder_forward.6} parent=0 // loop_footer
    %s14 = sadd.s32 1, %s10
  $region7: #{encoder_forward.6} parent=0 // loop_footer_branch
    %9 = sbr.rel target = $region3
  $region8: #{encoder_forward.6} parent=0 // loop_exit
    _

// kernel: encoder_forward.8
$region0: #{encoder_forward.8}
  #allocation0 [shape = 'u32[]', space=smem, size = 0x4, offset = 0x4, fixed_abs, tag = 'smem constant byte address 0x4 - core index']
  #allocation1 [shape = 'u32[144,128]{1,0:T(1,128)}', space=vmem, size = 0x12000, scoped, tag = 'internal scratch']
  %s0 = inlined_call_operand.vmem [shape: bf16[16,32], index: 0, kind: input, shape index: {}]
  %s1 = inlined_call_operand.vmem [shape: bf16[32,128], index: 1, kind: input, shape index: {}]
  %s2 = inlined_call_operand.vmem [shape: f32[1,128], index: 2, kind: input, shape index: {}]
  %s3 = inlined_call_operand.vmem [shape: bf16[128,32], index: 3, kind: input, shape index: {}]
  %s4 = inlined_call_operand.vmem [shape: f32[1,32], index: 4, kind: input, shape index: {}]
  %s5 = inlined_call_operand.vmem [shape: f32[1,32], index: 5, kind: input, shape index: {}]
  %s6 = inlined_call_operand.vmem [shape: f32[1,32], index: 6, kind: input, shape index: {}]
  %s7 = inlined_call_operand.vmem [shape: bf16[16,32], index: 7, kind: output, shape index: {}]
  %s8 = sld [smem:[#allocation0]]
  $region38: #{encoder_forward.8} parent=0
    _
  %s10 = ssub.s32 1, %s8
  %s11 = scalar_select 0, %s10, %s8
  // Predicated region
  $region2: #{encoder_forward.8} parent=0 // pred_check
    _
  $region3: #{encoder_forward.8} parent=0 // pred_check_branch
    %13 = sbr.rel (0) target = $region5
  $region4: #{encoder_forward.8} parent=0 // pred_region
    _
  $region5: #{encoder_forward.8} parent=0 // pred_fallthru
    _
  // Predicated region
  $region6: #{encoder_forward.8} parent=0 // pred_check
    _
  $region7: #{encoder_forward.8} parent=0 // pred_check_branch
    %15 = sbr.rel (0) target = $region9
  $region8: #{encoder_forward.8} parent=0 // pred_region
    _
  $region9: #{encoder_forward.8} parent=0 // pred_fallthru
    _
  // Predicated region
  $region10: #{encoder_forward.8} parent=0 // pred_check
    _
  $region11: #{encoder_forward.8} parent=0 // pred_check_branch
    %17 = sbr.rel (0) target = $region13
  $region12: #{encoder_forward.8} parent=0 // pred_region
    _
  $region13: #{encoder_forward.8} parent=0 // pred_fallthru
    _
  // Predicated region
  $region14: #{encoder_forward.8} parent=0 // pred_check
    _
  $region15: #{encoder_forward.8} parent=0 // pred_check_branch
    %19 = sbr.rel (0) target = $region17
  $region16: #{encoder_forward.8} parent=0 // pred_region
    _
  $region17: #{encoder_forward.8} parent=0 // pred_fallthru
    _
  // Predicated region
  $region18: #{encoder_forward.8} parent=0 // pred_check
    _
  $region19: #{encoder_forward.8} parent=0 // pred_check_branch
    %21 = sbr.rel (0) target = $region21
  $region20: #{encoder_forward.8} parent=0 // pred_region
    _
  $region21: #{encoder_forward.8} parent=0 // pred_fallthru
    _
  // Predicated region
  $region22: #{encoder_forward.8} parent=0 // pred_check
    _
  $region23: #{encoder_forward.8} parent=0 // pred_check_branch
    %23 = sbr.rel (0) target = $region25
  $region24: #{encoder_forward.8} parent=0 // pred_region
    _
  $region25: #{encoder_forward.8} parent=0 // pred_fallthru
    _
  // Predicated region
  $region26: #{encoder_forward.8} parent=0 // pred_check
    _
  $region27: #{encoder_forward.8} parent=0 // pred_check_branch
    %25 = sbr.rel (0) target = $region29
  $region28: #{encoder_forward.8} parent=0 // pred_region
    _
  $region29: #{encoder_forward.8} parent=0 // pred_fallthru
    _
  %v27 = vld [vmem:[%s0] sm:$0xf]
  %v28 = vld [vmem:[%s0 + $0x4] sm:$0xf]
  %v29 = vld [vmem:[%s1] sm:$0xf]
  %v30 = vld [vmem:[%s1 + $0x4] sm:$0xf]
  %v31 = vld [vmem:[%s1 + $0x8] sm:$0xf]
  %v32 = vld [vmem:[%s1 + $0xc] sm:$0xf]
  %v33 = vld [vmem:[%s2] sm:$0x1]
  %v35 = vlaneseq
  %v36 = vshrl.u32 %v35, 7
  %v37 = vsub.s32 0, %v36
  %v38 = vrot.slane %v33, %v37
  %v42 = vunpack.c.l.b16 %v27
  %v43 = vunpack.c.l.b16 %v28
  %v44 = vpack.c.b16 %v43, %v42
  %v49 = vunpack.c.l.b16 %v29
  %v50 = vunpack.c.l.b16 %v30
  %v51 = vunpack.c.l.b16 %v31
  %v52 = vunpack.c.l.b16 %v32
  %v53 = vpack.c.b16 %v50, %v49
  %v54 = vpack.c.b16 %v52, %v51
  %vm57 = vcmask 261120
  %v59 = vsel %vm57, %v44, 0
  %61 = vmatprep.subr.bf16.mxu0 0
  %62 = vmatpush1.bf16.msra.mxu0 %v53
  %63 = vmatprep.subr.bf16.mxu0 0
  %64 = vmatpush1.bf16.msra.mxu0 %v54
  %65 = vmatprep.subr.bf16.mxu0 0
  %66 = vmatpush1.bf16.msra.mxu0 0
  %67 = vmatprep.subr.bf16.mxu0 0
  %68 = vmatpush1.bf16.msra.mxu0 0
  %69 = vmatprep.subr.bf16.mxu0 0
  %70 = vmatpush1.bf16.msra.mxu0 0
  %71 = vmatprep.subr.bf16.mxu0 0
  %72 = vmatpush1.bf16.msra.mxu0 0
  %73 = vmatprep.subr.bf16.mxu0 0
  %74 = vmatpush1.bf16.msra.mxu0 0
  %75 = vmatprep.subr.bf16.mxu0 0
  %76 = vmatpush1.bf16.msra.mxu0 0
  %77 = vmatprep.subr.bf16.mxu0 0
  %78 = vmatpush1.bf16.msra.mxu0 0
  %79 = vmatprep.subr.bf16.mxu0 0
  %80 = vmatpush1.bf16.msra.mxu0 0
  %81 = vmatprep.subr.bf16.mxu0 0
  %82 = vmatpush1.bf16.msra.mxu0 0
  %83 = vmatprep.subr.bf16.mxu0 0
  %84 = vmatpush1.bf16.msra.mxu0 0
  %85 = vmatprep.subr.bf16.mxu0 0
  %86 = vmatpush1.bf16.msra.mxu0 0
  %87 = vmatprep.subr.bf16.mxu0 0
  %88 = vmatpush1.bf16.msra.mxu0 0
  %89 = vmatprep.subr.bf16.mxu0 0
  %90 = vmatpush1.bf16.msra.mxu0 0
  %91 = vmatprep.subr.bf16.mxu0 0
  %92 = vmatpush1.bf16.msra.mxu0 0
  %93 = vmatprep.mubr.bf16.mxu0 0
  %94 = vmatmul.mubr.bf16.gmra.mrb[0].mxu0 %v59
  %v95 = vpop.f32.mrb[0].mxu0
  %v96 = vadd.f32 %v38, %v95
  %v97 = vpop.f32.mrb[0].mxu0
  %v98 = vpop.f32.mrb[0].mxu0
  %v99 = vadd.f32 %v38, %v98
  %v100 = vpop.f32.mrb[0].mxu0
  %101 = vdwg.mxu0
  %v102 = vmax.f32 %v96, 0.0
  %v103 = vmax.f32 %v99, 0.0
  %v104 = vpack.c.bf16 %v103, %v102
  %v105 = vld [vmem:[%s3] sm:$0xf]
  %v106 = vld [vmem:[%s3 + $0x4] sm:$0xf]
  %v107 = vld [vmem:[%s3 + $0x8] sm:$0xf]
  %v108 = vld [vmem:[%s3 + $0xc] sm:$0xf]
  %v109 = vld [vmem:[%s3 + $0x10] sm:$0xf]
  %v110 = vld [vmem:[%s3 + $0x14] sm:$0xf]
  %v111 = vld [vmem:[%s3 + $0x18] sm:$0xf]
  %v112 = vld [vmem:[%s3 + $0x1c] sm:$0xf]
  %v113 = vld [vmem:[%s3 + $0x20] sm:$0xf]
  %v114 = vld [vmem:[%s3 + $0x24] sm:$0xf]
  %v115 = vld [vmem:[%s3 + $0x28] sm:$0xf]
  %v116 = vld [vmem:[%s3 + $0x2c] sm:$0xf]
  %v117 = vld [vmem:[%s3 + $0x30] sm:$0xf]
  %v118 = vld [vmem:[%s3 + $0x34] sm:$0xf]
  %v119 = vld [vmem:[%s3 + $0x38] sm:$0xf]
  %v120 = vld [vmem:[%s3 + $0x3c] sm:$0xf]
  %v121 = vld [vmem:[%s4] sm:$0x1]
  %v123 = vlaneseq
  %v124 = vshrl.u32 %v123, 7
  %v125 = vsub.s32 0, %v124
  %v126 = vrot.slane %v121, %v125
  %v144 = vunpack.c.l.b16 %v105
  %v145 = vunpack.c.l.b16 %v106
  %v146 = vunpack.c.l.b16 %v107
  %v147 = vunpack.c.l.b16 %v108
  %v148 = vunpack.c.l.b16 %v109
  %v149 = vunpack.c.l.b16 %v110
  %v150 = vunpack.c.l.b16 %v111
  %v151 = vunpack.c.l.b16 %v112
  %v152 = vunpack.c.l.b16 %v113
  %v153 = vunpack.c.l.b16 %v114
  %v154 = vunpack.c.l.b16 %v115
  %v155 = vunpack.c.l.b16 %v116
  %v156 = vunpack.c.l.b16 %v117
  %v157 = vunpack.c.l.b16 %v118
  %v158 = vunpack.c.l.b16 %v119
  %v159 = vunpack.c.l.b16 %v120
  %v160 = vpack.c.b16 %v145, %v144
  %v161 = vpack.c.b16 %v147, %v146
  %v162 = vpack.c.b16 %v149, %v148
  %v163 = vpack.c.b16 %v151, %v150
  %v164 = vpack.c.b16 %v153, %v152
  %v165 = vpack.c.b16 %v155, %v154
  %v166 = vpack.c.b16 %v157, %v156
  %v167 = vpack.c.b16 %v159, %v158
  %176 = vmatprep.subr.bf16.mxu0 0
  %177 = vmatpush1.bf16.msra.mxu0 %v160
  %178 = vmatprep.subr.bf16.mxu0 0
  %179 = vmatpush1.bf16.msra.mxu0 %v161
  %180 = vmatprep.subr.bf16.mxu0 0
  %181 = vmatpush1.bf16.msra.mxu0 %v162
  %182 = vmatprep.subr.bf16.mxu0 0
  %183 = vmatpush1.bf16.msra.mxu0 %v163
  %184 = vmatprep.subr.bf16.mxu0 0
  %185 = vmatpush1.bf16.msra.mxu0 %v164
  %186 = vmatprep.subr.bf16.mxu0 0
  %187 = vmatpush1.bf16.msra.mxu0 %v165
  %188 = vmatprep.subr.bf16.mxu0 0
  %189 = vmatpush1.bf16.msra.mxu0 %v166
  %190 = vmatprep.subr.bf16.mxu0 0
  %191 = vmatpush1.bf16.msra.mxu0 %v167
  %192 = vmatprep.subr.bf16.mxu0 0
  %193 = vmatpush1.bf16.msra.mxu0 0
  %194 = vmatprep.subr.bf16.mxu0 0
  %195 = vmatpush1.bf16.msra.mxu0 0
  %196 = vmatprep.subr.bf16.mxu0 0
  %197 = vmatpush1.bf16.msra.mxu0 0
  %198 = vmatprep.subr.bf16.mxu0 0
  %199 = vmatpush1.bf16.msra.mxu0 0
  %200 = vmatprep.subr.bf16.mxu0 0
  %201 = vmatpush1.bf16.msra.mxu0 0
  %202 = vmatprep.subr.bf16.mxu0 0
  %203 = vmatpush1.bf16.msra.mxu0 0
  %204 = vmatprep.subr.bf16.mxu0 0
  %205 = vmatpush1.bf16.msra.mxu0 0
  %206 = vmatprep.subr.bf16.mxu0 0
  %207 = vmatpush1.bf16.msra.mxu0 0
  %208 = vmatprep.mubr.bf16.mxu0 0
  %209 = vmatmul.mubr.bf16.gmra.mrb[0].mxu0 %v104
  %v210 = vpop.f32.mrb[0].mxu0
  %v211 = vadd.f32 %v126, %v210
  %v212 = vpop.f32.mrb[0].mxu0
  %v213 = vpop.f32.mrb[0].mxu0
  %v214 = vadd.f32 %v126, %v213
  %v215 = vpop.f32.mrb[0].mxu0
  %216 = vdwg.mxu0
  %v217 = vunpack.c.l.bf16 %v27
  %v218 = vunpack.c.l.bf16 %v28
  %v219 = vadd.f32 %v217, %v211
  %v220 = vadd.f32 %v218, %v214
  %v221 = vsel %vm57, %v219, 0.0
  %222 = vadd.xlane.f32.xlu0 %v221
  %v223 = vpop.xlane.xlu0 %222
  %v224 = vsel %vm57, %v220, 0.0
  %225 = vadd.xlane.f32.xlu0 %v224
  %v226 = vpop.xlane.xlu0 %225
  %v227 = vrcp.pop 32.0
  %v228 = vmul.f32 %v223, %v227
  %v229 = vmul.f32 %v226, %v227
  %v230 = vsub.f32 %v219, %v228
  %v231 = vsub.f32 %v220, %v229
  %v232 = vmul.f32 %v230, %v230
  %v233 = vmul.f32 %v231, %v231
  %v234 = vsel %vm57, %v232, 0.0
  %235 = vadd.xlane.f32.xlu0 %v234
  %v236 = vpop.xlane.xlu0 %235
  %v237 = vsel %vm57, %v233, 0.0
  %238 = vadd.xlane.f32.xlu0 %v237
  %v239 = vpop.xlane.xlu0 %238
  %v240 = vmul.f32 %v236, %v227
  %v241 = vmul.f32 %v239, %v227
  %v242 = vadd.f32 %v240, 1e-05
  %v243 = vadd.f32 %v241, 1e-05
  %v244 = vrsqrt.pop %v242
  %v245 = vrsqrt.pop %v243
  %v246 = vmul.f32 %v230, %v244
  %v247 = vmul.f32 %v231, %v245
  %v248 = vld [vmem:[%s5] sm:$0x1]
  %v250 = vlaneseq
  %v251 = vshrl.u32 %v250, 7
  %v252 = vsub.s32 0, %v251
  %v253 = vrot.slane %v248, %v252
  %v255 = vmul.f32 %v246, %v253
  %v256 = vmul.f32 %v247, %v253
  %v257 = vld [vmem:[%s6] sm:$0x1]
  %v259 = vlaneseq
  %v260 = vshrl.u32 %v259, 7
  %v261 = vsub.s32 0, %v260
  %v262 = vrot.slane %v257, %v261
  %v264 = vadd.f32 %v255, %v262
  %v265 = vadd.f32 %v256, %v262
  %v266 = vpack.c.bf16 %v265, %v264
  %v268 = vunpack.c.l.b16 %v266
  %v269 = vunpack.c.h.b16 %v266
  %v270 = vpack.c.b16 %v268, %v268
  %v271 = vpack.c.b16 %v269, %v269
  %vm274 = vcmask 257024
  %275 = vst.msk [vmem:[%s7] sm:$0xf] %vm274, %v270
  %276 = vst.msk [vmem:[%s7 + $0x4] sm:$0xf] %vm274, %v271
  // Predicated region
  $region30: #{encoder_forward.8} parent=0 // pred_check
    _
  $region31: #{encoder_forward.8} parent=0 // pred_check_branch
    %278 = sbr.rel (0) target = $region33
  $region32: #{encoder_forward.8} parent=0 // pred_region
    _
  $region33: #{encoder_forward.8} parent=0 // pred_fallthru
    _
  // Predicated region
  $region34: #{encoder_forward.8} parent=0 // pred_check
    _
  $region35: #{encoder_forward.8} parent=0 // pred_check_branch
    %280 = sbr.rel (0) target = $region37
  $region36: #{encoder_forward.8} parent=0 // pred_region
    _
  $region37: #{encoder_forward.8} parent=0 // pred_fallthru
    _

</llo_original>
